<compile_context>
chip_gen: v6e
topology: v6e:2x2x1
jax: 0.10.0
libtpu: 0.0.40
codegen_flags: <defaults>
</compile_context>

<pallas_src>
from math import sqrt

import jax
import jax.numpy as jnp
from jax.experimental import pallas as pl
from jax.experimental.pallas import tpu as pltpu

GLOB = 512        # size of global code encodings[-1]
TRANS = 12        # transform feature size
HID = 128         # MLP hidden size
DPT = 3 + TRANS   # points + transform = 15
DFF = DPT + 2     # points + transform + coords = 17 (glob hoisted out)


# ----------------------------------------------------------------------------
# Pallas kernel: one AttentionFold step for a (NB batch x PT point) tile.
# ----------------------------------------------------------------------------
def _fold_kernel(ff_ref, pts_ref, filt_ref, gg_ref, fg_ref,
                 wfused_ref, bs1_ref, bg1_ref, bf1_ref,
                 ws2_ref, bs2_ref, wg2_ref, bg2_ref,
                 wf1s_ref, wf2_ref, bf2_ref, wf3_ref, bf3_ref,
                 out_ref):
    f32, bf16 = jnp.float32, jnp.bfloat16
    NB, PT, Din = ff_ref.shape
    HW, C = filt_ref.shape[1], filt_ref.shape[2]
    M = NB * PT

    xb = ff_ref[...].reshape(M, Din)                            # (M, 17) bf16

    # --- fused first layers: [spat | gate | fold(pt/tr/coords)] ------------------
    fused = jnp.dot(xb, wfused_ref[...],
                    preferred_element_type=f32).reshape(NB, PT, 3 * HID)

    # per-batch hoisted glob biases added via implicit (NB,1,HID) broadcast
    hs = jnp.maximum(fused[..., :HID] + bs1_ref[...], 0.0)                    # (NB,PT,128)
    hg = jnp.maximum(fused[..., HID:2 * HID] + bg1_ref[...] + gg_ref[...], 0.0)
    h1p = fused[..., 2 * HID:] + bf1_ref[...] + fg_ref[...]   # partial fold layer-1 pre-act
    hs = hs.reshape(M, HID)
    hg = hg.reshape(M, HID)
    h1p = h1p.reshape(M, HID)

    # --- spatial attention -> softmax over H*W -----------------------------------
    logits = jnp.dot(hs.astype(bf16), ws2_ref[...],
                     preferred_element_type=f32) + bs2_ref[...]                # (M,HW)
    logits = logits - jnp.max(logits, axis=-1, keepdims=True)
    e = jnp.exp(logits)
    sattn = e * pl.reciprocal(jnp.sum(e, axis=-1, keepdims=True), approx=True)  # (M,HW)

    # --- gate -> sigmoid ----------------------------------------------------------
    gattn = jax.nn.sigmoid(
        jnp.dot(hg.astype(bf16), wg2_ref[...], preferred_element_type=f32)
        + bg2_ref[...])                                                         # (M,C)

    # --- attention-weighted pooling of conv filters (filt is (NB, HW, C)) --------
    # contraction is over the sublane-major dim of filt -> straight MXU matmul,
    # no XLU transpose of the largest operand.
    spat_map = jnp.einsum('bpk,bkc->bpc',
                          sattn.reshape(NB, PT, HW).astype(bf16), filt_ref[...],
                          preferred_element_type=f32)                           # (NB,PT,C)
    spat_feats = gattn * spat_map.reshape(M, C)                                 # (M,C)

    # --- fold MLP ----------------------------------------------------------------
    h1 = jnp.maximum(
        h1p + jnp.dot(spat_feats.astype(bf16), wf1s_ref[...],
                      preferred_element_type=f32), 0.0)
    h2 = jnp.maximum(
        jnp.dot(h1.astype(bf16), wf2_ref[...], preferred_element_type=f32)
        + bf2_ref[...], 0.0)
    deform = jnp.dot(h2.astype(bf16), wf3_ref[...],
                     preferred_element_type=f32) + bf3_ref[...]                 # (M,3)

    pts = deform + pts_ref[...].reshape(M, 3)
    # TODO(synk): normalize_points source not provided upstream; using L2
    # unit-sphere normalization (rsqrt keeps the divide on the EUP).
    ss = jnp.sum(pts * pts, axis=-1, keepdims=True)
    out_ref[...] = (pts * jax.lax.rsqrt(jnp.maximum(ss, 1e-24))).reshape(NB, PT, 3)


# ----------------------------------------------------------------------------
# JAX glue: one AttentionFold level (builds reduced fold features, hoists glob,
# fuses first-layer weights, picks tiles, calls the kernel).
# ----------------------------------------------------------------------------
def spatial_grid(g):
    # TODO(synk): spatial_grid source not provided upstream; [-1,1]^2 ij-meshgrid.
    lin = jnp.linspace(-1.0, 1.0, g, dtype=jnp.float32)
    xx, yy = jnp.meshgrid(lin, lin, indexing="ij")
    return jnp.stack([xx.reshape(-1), yy.reshape(-1)], axis=-1)   # (g*g, 2)


def _vmem_limit_bytes():
    # Raise the scoped-VMEM limit (v5e default is 16 MiB of 128; v6e/v7x 32 MiB),
    # derived per generation so v7x (64 MiB physical) is not oversubscribed.
    try:
        cap = int(pltpu.get_tpu_info().vmem_capacity_bytes)
    except Exception:
        cap = 64 * 1024 * 1024            # conservative fallback (v7x-safe)
    return min((cap * 3) // 4, 100 * 1024 * 1024)


def _divisors(n):
    return [d for d in range(1, n + 1) if n % d == 0]


def _select_tiles(N, P, C, HW, vmem_budget):
    """Pick (batch tile NB, point tile PT) for the 2-D grid."""
    # PT must satisfy the sublane rule (multiple of 16 covers bf16 packing) or be
    # the full extent of P.
    pt_opts = sorted({d for d in _divisors(P) if d % 16 == 0} | {P})
    nb_opts = _divisors(N)

    def vmem_bytes(nb, pt):
        m = nb * pt
        filt = 2 * nb * HW * C * 2                          # dbl-buffered bf16 filters
        stream = 2 * nb * pt * (DFF * 2 + 3 * 4 + 3 * 4)    # ff + points + out blocks
        temps = m * (3 * HW + 4 * HID + 2 * C) * 4          # softmax temps + MLP acts
        wts = 4 * (DFF * 3 * HID + HID * HW + 2 * HID * C + HID * HID)
        return filt + stream + temps + wts

    best, best_key = None, None
    for nb in nb_opts:
        for pt in pt_opts:
            if vmem_bytes(nb, pt) > vmem_budget:
                continue
            m = nb * pt
            steps = (N // nb) * (P // pt)
            key = (steps >= 2,          # >=2 parallel steps -> both v7x TensorCores
                   m % 256 == 0,        # fill MXU rows (256 on v6e/v7x)
                   min(m, 2048),        # amortize ~0.35us/step grid overhead
                   -steps)              # then fewest steps
            if best_key is None or key > best_key:
                best, best_key = (nb, pt), key
    if best is None:                    # nothing fit the budget: smallest legal tile
        best = (1, pt_opts[0])
    return best


def attention_fold(points, transform, glob, filters, params,
                   batch_block=None, point_block=None):
    # TODO(synk): factor != 1 / upsample not supported (defaults used by AttentionFoldNet).
    N, P, _ = points.shape
    C, H, W = filters.shape[1], filters.shape[2], filters.shape[3]
    HW = H * W
    g = int(sqrt(P))
    bf16 = jnp.bfloat16

    vmem_limit = _vmem_limit_bytes()
    NB, PT = _select_tiles(N, P, C, HW, vmem_budget=(vmem_limit * 3) // 5)
    if batch_block is not None:
        NB = batch_block
    if point_block is not None:
        PT = point_block
    assert N % NB == 0 and P % PT == 0

    # reduced per-point features: [points, transform, coords] (glob hoisted out),
    # streamed bf16; points kept separately in f32 so the deform residual is exact.
    coords = jnp.broadcast_to(spatial_grid(g)[None], (N, P, 2))
    ff = jnp.concatenate([points, transform, coords], axis=-1).astype(bf16)   # (N,P,17)

    # conv feature maps NCHW -> (N, HW, C) bf16: the pooling contraction then runs
    # as a straight (PT,HW)@(HW,C) MXU matmul, no in-kernel XLU transpose.
    # TODO(synk): emit NHWC/bf16 from the encoder so this transpose+cast fuses upstream.
    filt = filters.reshape(N, C, HW).transpose(0, 2, 1).astype(bf16)          # (N,HW,C)

    ws1, bs1, ws2, bs2 = params["spat"]
    wg1, bg1, wg2, bg2 = params["gate"]
    wf1, bf1, wf2, bf2, wf3, bf3 = params["fold"]

    # fold-MLP layer-1 row layout: [points(3), transform(12), glob(512), coords(2), spat(C)]
    # gate-MLP layer-1 row layout: [points(3), transform(12), glob(512)]
    # --- hoist the broadcast glob contributions as per-batch bias vectors --------
    gate_glob = (glob @ wg1[DPT:DPT + GLOB])[:, None, :]                # (N, 1, 128)
    fold_glob = (glob @ wf1[DPT:DPT + GLOB])[:, None, :]                # (N, 1, 128)

    # --- fuse spat / gate / fold first layers into one (17, 384) weight ----------
    z2 = jnp.zeros((2, HID), jnp.float32)
    w_spat = jnp.concatenate([ws1, z2], axis=0)                                   # (17,128)
    w_gate = jnp.concatenate([wg1[:DPT], z2], axis=0)                             # (17,128)
    w_fold = jnp.concatenate([wf1[:DPT], wf1[DPT + GLOB:DPT + GLOB + 2]], axis=0) # (17,128)
    w_fused = jnp.concatenate([w_spat, w_gate, w_fold], axis=1).astype(bf16)      # (17,384)

    wf1_spat = wf1[DPT + GLOB + 2:].astype(bf16)                                  # (C,128)

    weight_args = (w_fused, bs1, bg1, bf1,
                   ws2.astype(bf16), bs2,
                   wg2.astype(bf16), bg2,
                   wf1_spat, wf2.astype(bf16), bf2,
                   wf3.astype(bf16), bf3)

    def full_spec(arr):
        return pl.BlockSpec(arr.shape, lambda b, p, _nd=arr.ndim: (0,) * _nd)

    in_specs = (
        [pl.BlockSpec((NB, PT, DFF), lambda b, p: (b, p, 0)),     # ff (bf16)
         pl.BlockSpec((NB, PT, 3), lambda b, p: (b, p, 0)),       # points (f32 residual)
         # filters ignore the point axis -> block stays resident across P-steps.
         # TODO(synk): pipeline_mode=pl.Buffered(3) here if profiling shows exposed
         # filt DMA on v5e/v6e (keep 2 buffers inside v7x's 64 MiB).
         pl.BlockSpec((NB, HW, C), lambda b, p: (b, 0, 0)),
         pl.BlockSpec((NB, 1, HID), lambda b, p: (b, 0, 0)),      # gate glob bias
         pl.BlockSpec((NB, 1, HID), lambda b, p: (b, 0, 0))]      # fold glob bias
        + [full_spec(a) for a in weight_args])

    out = pl.pallas_call(
        _fold_kernel,
        out_shape=jax.ShapeDtypeStruct((N, P, 3), jnp.float32),
        grid=(N // NB, P // PT),
        in_specs=in_specs,
        out_specs=pl.BlockSpec((NB, PT, 3), lambda b, p: (b, p, 0)),
        compiler_params=pltpu.CompilerParams(
            dimension_semantics=("parallel", "parallel"),
            vmem_limit_bytes=vmem_limit),
    )(ff, points, filt, gate_glob, fold_glob, *weight_args)
    return out


def attention_fold_net(points, encodings, transform, net_params):
    N = points.shape[0]
    glob = encodings[-1].reshape(N, -1)            # encodings[-1].view(N, 1, -1)
    for enc_level, fold_params in net_params:
        points = attention_fold(points, transform, glob, encodings[enc_level], fold_params)
    return points


# ----------------------------------------------------------------------------
# Deterministic parameter init (torch.nn.Linear-style uniform init).
# ----------------------------------------------------------------------------
def _linear_init(key, fan_in, fan_out):
    kw, kb = jax.random.split(key)
    bound = 1.0 / sqrt(fan_in)
    w = jax.random.uniform(kw, (fan_in, fan_out), jnp.float32, -bound, bound)
    b = jax.random.uniform(kb, (1, fan_out), jnp.float32, -bound, bound)
    return w, b


def _make_mlp_params(key, sizes):
    params = []
    for i in range(len(sizes) - 1):
        key, sub = jax.random.split(key)
        w, b = _linear_init(sub, sizes[i], sizes[i + 1])
        params += [w, b]
    return params


def init_attention_fold_net(key):
    # (encoding_level, C, H*W) matching fold/spat/gate default cfg zips:
    # i = 2,1,0 ; C = 256,128,64 ; spatial = 14*14, 28*28, 56*56
    levels = [(2, 256, 14 * 14), (1, 128, 28 * 28), (0, 64, 56 * 56)]
    net = []
    for enc_level, C, HW in levels:
        key, ks, kg, kf = jax.random.split(key, 4)
        spat = _make_mlp_params(ks, [3 + TRANS, HID, HW])                 # 1 hidden layer
        gate = _make_mlp_params(kg, [GLOB + 3 + TRANS, HID, C])           # 1 hidden layer
        gate[-1] = jnp.ones_like(gate[-1])                                # gate_mlp[-1].bias.fill_(1)
        fold = _make_mlp_params(kf, [C + GLOB + 3 + 2 + TRANS, HID, HID, 3])  # 2 hidden layers
        net.append((enc_level, {"spat": spat, "gate": gate, "fold": fold}))
    return net


# ----------------------------------------------------------------------------
if __name__ == "__main__":
    key = jax.random.PRNGKey(0)
    k_pts, k_tr, k_enc, k_par = jax.random.split(key, 4)

    N, P = 2, 16                      # P must be a perfect square (folding grid)
    points = jax.random.normal(k_pts, (N, P, 3), jnp.float32)
    transform = jax.random.normal(k_tr, (N, P, TRANS), jnp.float32)

    ek = jax.random.split(k_enc, 4)
    encodings = [
        jax.random.normal(ek[0], (N, 64, 56, 56), jnp.float32),    # level 0
        jax.random.normal(ek[1], (N, 128, 28, 28), jnp.float32),   # level 1
        jax.random.normal(ek[2], (N, 256, 14, 14), jnp.float32),   # level 2
        jax.random.normal(ek[3], (N, GLOB), jnp.float32),          # global code (encodings[-1])
    ]

    net_params = init_attention_fold_net(k_par)
    out = attention_fold_net(points, encodings, transform, net_params)
    jax.block_until_ready(out)
    assert out.shape == (N, P, 3)
    print("KERNEL_OK")
</pallas_src>

<mosaic_0001>
module attributes {stable_mosaic.version = 11 : i64} {
  func.func @_fold_kernel(%arg0: i32, %arg1: i32, %arg2: memref<1x16x17xbf16, #tpu.memory_space<vmem>>, %arg3: memref<1x16x3xf32, #tpu.memory_space<vmem>>, %arg4: memref<1x196x256xbf16, #tpu.memory_space<vmem>>, %arg5: memref<1x1x128xf32, #tpu.memory_space<vmem>>, %arg6: memref<1x1x128xf32, #tpu.memory_space<vmem>>, %arg7: memref<17x384xbf16, #tpu.memory_space<vmem>>, %arg8: memref<1x128xf32, #tpu.memory_space<vmem>>, %arg9: memref<1x128xf32, #tpu.memory_space<vmem>>, %arg10: memref<1x128xf32, #tpu.memory_space<vmem>>, %arg11: memref<128x196xbf16, #tpu.memory_space<vmem>>, %arg12: memref<1x196xf32, #tpu.memory_space<vmem>>, %arg13: memref<128x256xbf16, #tpu.memory_space<vmem>>, %arg14: memref<1x256xf32, #tpu.memory_space<vmem>>, %arg15: memref<256x128xbf16, #tpu.memory_space<vmem>>, %arg16: memref<128x128xbf16, #tpu.memory_space<vmem>>, %arg17: memref<1x128xf32, #tpu.memory_space<vmem>>, %arg18: memref<128x3xbf16, #tpu.memory_space<vmem>>, %arg19: memref<1x3xf32, #tpu.memory_space<vmem>>, %arg20: memref<1x16x3xf32, #tpu.memory_space<vmem>>) attributes {dimension_semantics = [#tpu.dimension_semantics<parallel>, #tpu.dimension_semantics<parallel>], iteration_bounds = array<i64: 2, 1>, scalar_prefetch = 0 : i64, scratch_operands = 0 : i64, tpu.core_type = #tpu.core_type<tc>, window_params = [{transform_indices = @transform_0, window_bounds = array<i64: 1, 16, 17>}, {transform_indices = @transform_1, window_bounds = array<i64: 1, 16, 3>}, {transform_indices = @transform_2, window_bounds = array<i64: 1, 196, 256>}, {transform_indices = @transform_3, window_bounds = array<i64: 1, 1, 128>}, {transform_indices = @transform_4, window_bounds = array<i64: 1, 1, 128>}, {pipeline_mode = #tpu.pipeline_mode<synchronous>, transform_indices = @transform_5, window_bounds = array<i64: 17, 384>}, {pipeline_mode = #tpu.pipeline_mode<synchronous>, transform_indices = @transform_6, window_bounds = array<i64: 1, 128>}, {pipeline_mode = #tpu.pipeline_mode<synchronous>, transform_indices = @transform_7, window_bounds = array<i64: 1, 128>}, {pipeline_mode = #tpu.pipeline_mode<synchronous>, transform_indices = @transform_8, window_bounds = array<i64: 1, 128>}, {pipeline_mode = #tpu.pipeline_mode<synchronous>, transform_indices = @transform_9, window_bounds = array<i64: 128, 196>}, {pipeline_mode = #tpu.pipeline_mode<synchronous>, transform_indices = @transform_10, window_bounds = array<i64: 1, 196>}, {pipeline_mode = #tpu.pipeline_mode<synchronous>, transform_indices = @transform_11, window_bounds = array<i64: 128, 256>}, {pipeline_mode = #tpu.pipeline_mode<synchronous>, transform_indices = @transform_12, window_bounds = array<i64: 1, 256>}, {pipeline_mode = #tpu.pipeline_mode<synchronous>, transform_indices = @transform_13, window_bounds = array<i64: 256, 128>}, {pipeline_mode = #tpu.pipeline_mode<synchronous>, transform_indices = @transform_14, window_bounds = array<i64: 128, 128>}, {pipeline_mode = #tpu.pipeline_mode<synchronous>, transform_indices = @transform_15, window_bounds = array<i64: 1, 128>}, {pipeline_mode = #tpu.pipeline_mode<synchronous>, transform_indices = @transform_16, window_bounds = array<i64: 128, 3>}, {pipeline_mode = #tpu.pipeline_mode<synchronous>, transform_indices = @transform_17, window_bounds = array<i64: 1, 3>}, {transform_indices = @transform_18, window_bounds = array<i64: 1, 16, 3>}]} {
    %c0 = arith.constant 0 : index
    %c0_0 = arith.constant 0 : index
    %c0_1 = arith.constant 0 : index
    %0 = vector.load %arg2[%c0, %c0_0, %c0_1] : memref<1x16x17xbf16, #tpu.memory_space<vmem>>, vector<1x16x17xbf16>
    %1 = vector.shape_cast %0 : vector<1x16x17xbf16> to vector<16x17xbf16>
    %c0_2 = arith.constant 0 : index
    %c0_3 = arith.constant 0 : index
    %2 = vector.load %arg7[%c0_2, %c0_3] : memref<17x384xbf16, #tpu.memory_space<vmem>>, vector<17x384xbf16>
    %cst = arith.constant dense<0.000000e+00> : vector<16x384xf32>
    %3 = tpu.matmul %1, %2, %cst {dimension_numbers = #tpu.dot_dimension_numbers<[1], [0], [0], [1], [0, 0, 1, 1], [], []>} : vector<16x17xbf16>, vector<17x384xbf16>, vector<16x384xf32> -> vector<16x384xf32>
    %4 = vector.shape_cast %3 : vector<16x384xf32> to vector<1x16x384xf32>
    %5 = vector.extract_strided_slice %4 {offsets = [0, 0, 0], sizes = [1, 16, 128], strides = [1, 1, 1]} : vector<1x16x384xf32> to vector<1x16x128xf32>
    %c0_4 = arith.constant 0 : index
    %c0_5 = arith.constant 0 : index
    %6 = vector.load %arg8[%c0_4, %c0_5] : memref<1x128xf32, #tpu.memory_space<vmem>>, vector<1x128xf32>
    %7 = vector.shape_cast %6 : vector<1x128xf32> to vector<1x1x128xf32>
    %8 = vector.broadcast %7 : vector<1x1x128xf32> to vector<1x16x128xf32>
    %9 = arith.addf %5, %8 : vector<1x16x128xf32>
    %cst_6 = arith.constant 0.000000e+00 : f32
    %10 = vector.broadcast %cst_6 : f32 to vector<1x16x128xf32>
    %11 = arith.maximumf %9, %10 : vector<1x16x128xf32>
    %12 = vector.extract_strided_slice %4 {offsets = [0, 0, 128], sizes = [1, 16, 128], strides = [1, 1, 1]} : vector<1x16x384xf32> to vector<1x16x128xf32>
    %c0_7 = arith.constant 0 : index
    %c0_8 = arith.constant 0 : index
    %13 = vector.load %arg9[%c0_7, %c0_8] : memref<1x128xf32, #tpu.memory_space<vmem>>, vector<1x128xf32>
    %14 = vector.shape_cast %13 : vector<1x128xf32> to vector<1x1x128xf32>
    %15 = vector.broadcast %14 : vector<1x1x128xf32> to vector<1x16x128xf32>
    %16 = arith.addf %12, %15 : vector<1x16x128xf32>
    %c0_9 = arith.constant 0 : index
    %c0_10 = arith.constant 0 : index
    %c0_11 = arith.constant 0 : index
    %17 = vector.load %arg5[%c0_9, %c0_10, %c0_11] : memref<1x1x128xf32, #tpu.memory_space<vmem>>, vector<1x1x128xf32>
    %18 = vector.broadcast %17 : vector<1x1x128xf32> to vector<1x16x128xf32>
    %19 = arith.addf %16, %18 : vector<1x16x128xf32>
    %cst_12 = arith.constant 0.000000e+00 : f32
    %20 = vector.broadcast %cst_12 : f32 to vector<1x16x128xf32>
    %21 = arith.maximumf %19, %20 : vector<1x16x128xf32>
    %22 = vector.extract_strided_slice %4 {offsets = [0, 0, 256], sizes = [1, 16, 128], strides = [1, 1, 1]} : vector<1x16x384xf32> to vector<1x16x128xf32>
    %c0_13 = arith.constant 0 : index
    %c0_14 = arith.constant 0 : index
    %23 = vector.load %arg10[%c0_13, %c0_14] : memref<1x128xf32, #tpu.memory_space<vmem>>, vector<1x128xf32>
    %24 = vector.shape_cast %23 : vector<1x128xf32> to vector<1x1x128xf32>
    %25 = vector.broadcast %24 : vector<1x1x128xf32> to vector<1x16x128xf32>
    %26 = arith.addf %22, %25 : vector<1x16x128xf32>
    %c0_15 = arith.constant 0 : index
    %c0_16 = arith.constant 0 : index
    %c0_17 = arith.constant 0 : index
    %27 = vector.load %arg6[%c0_15, %c0_16, %c0_17] : memref<1x1x128xf32, #tpu.memory_space<vmem>>, vector<1x1x128xf32>
    %28 = vector.broadcast %27 : vector<1x1x128xf32> to vector<1x16x128xf32>
    %29 = arith.addf %26, %28 : vector<1x16x128xf32>
    %30 = vector.shape_cast %11 : vector<1x16x128xf32> to vector<16x128xf32>
    %31 = vector.shape_cast %21 : vector<1x16x128xf32> to vector<16x128xf32>
    %32 = vector.shape_cast %29 : vector<1x16x128xf32> to vector<16x128xf32>
    %33 = arith.truncf %30 : vector<16x128xf32> to vector<16x128xbf16>
    %c0_18 = arith.constant 0 : index
    %c0_19 = arith.constant 0 : index
    %34 = vector.load %arg11[%c0_18, %c0_19] : memref<128x196xbf16, #tpu.memory_space<vmem>>, vector<128x196xbf16>
    %cst_20 = arith.constant dense<0.000000e+00> : vector<16x196xf32>
    %35 = tpu.matmul %33, %34, %cst_20 {dimension_numbers = #tpu.dot_dimension_numbers<[1], [0], [0], [1], [0, 0, 1, 1], [], []>} : vector<16x128xbf16>, vector<128x196xbf16>, vector<16x196xf32> -> vector<16x196xf32>
    %c0_21 = arith.constant 0 : index
    %c0_22 = arith.constant 0 : index
    %36 = vector.load %arg12[%c0_21, %c0_22] : memref<1x196xf32, #tpu.memory_space<vmem>>, vector<1x196xf32>
    %37 = vector.broadcast %36 : vector<1x196xf32> to vector<16x196xf32>
    %38 = arith.addf %35, %37 : vector<16x196xf32>
    %cst_23 = arith.constant dense<0xFF800000> : vector<16xf32>
    %39 = vector.multi_reduction <maximumf>, %38, %cst_23 [1] : vector<16x196xf32> to vector<16xf32>
    %40 = vector.shape_cast %39 : vector<16xf32> to vector<16x1xf32>
    %41 = vector.broadcast %40 : vector<16x1xf32> to vector<16x196xf32>
    %42 = arith.subf %38, %41 : vector<16x196xf32>
    %43 = math.exp %42 : vector<16x196xf32>
    %cst_24 = arith.constant dense<0.000000e+00> : vector<16xf32>
    %44 = vector.multi_reduction <add>, %43, %cst_24 [1] : vector<16x196xf32> to vector<16xf32>
    %45 = vector.shape_cast %44 : vector<16xf32> to vector<16x1xf32>
    %46 = tpu.reciprocal %45 {approx = true} : vector<16x1xf32> -> vector<16x1xf32>
    %47 = vector.broadcast %46 : vector<16x1xf32> to vector<16x196xf32>
    %48 = arith.mulf %43, %47 : vector<16x196xf32>
    %49 = arith.truncf %31 : vector<16x128xf32> to vector<16x128xbf16>
    %c0_25 = arith.constant 0 : index
    %c0_26 = arith.constant 0 : index
    %50 = vector.load %arg13[%c0_25, %c0_26] : memref<128x256xbf16, #tpu.memory_space<vmem>>, vector<128x256xbf16>
    %cst_27 = arith.constant dense<0.000000e+00> : vector<16x256xf32>
    %51 = tpu.matmul %49, %50, %cst_27 {dimension_numbers = #tpu.dot_dimension_numbers<[1], [0], [0], [1], [0, 0, 1, 1], [], []>} : vector<16x128xbf16>, vector<128x256xbf16>, vector<16x256xf32> -> vector<16x256xf32>
    %c0_28 = arith.constant 0 : index
    %c0_29 = arith.constant 0 : index
    %52 = vector.load %arg14[%c0_28, %c0_29] : memref<1x256xf32, #tpu.memory_space<vmem>>, vector<1x256xf32>
    %53 = vector.broadcast %52 : vector<1x256xf32> to vector<16x256xf32>
    %54 = arith.addf %51, %53 : vector<16x256xf32>
    %55 = arith.negf %54 : vector<16x256xf32>
    %56 = math.exp %55 : vector<16x256xf32>
    %cst_30 = arith.constant 1.000000e+00 : f32
    %57 = vector.broadcast %cst_30 : f32 to vector<16x256xf32>
    %58 = arith.addf %57, %56 : vector<16x256xf32>
    %59 = arith.divf %57, %58 : vector<16x256xf32>
    %60 = vector.shape_cast %48 : vector<16x196xf32> to vector<1x16x196xf32>
    %61 = arith.truncf %60 : vector<1x16x196xf32> to vector<1x16x196xbf16>
    %c0_31 = arith.constant 0 : index
    %c0_32 = arith.constant 0 : index
    %c0_33 = arith.constant 0 : index
    %62 = vector.load %arg4[%c0_31, %c0_32, %c0_33] : memref<1x196x256xbf16, #tpu.memory_space<vmem>>, vector<1x196x256xbf16>
    "tpu.trace_start"() <{level = 10 : i32, message = "bpk,bkc->bpc"}> : () -> ()
    %cst_34 = arith.constant dense<0.000000e+00> : vector<1x16x256xf32>
    %63 = tpu.matmul %61, %62, %cst_34 {dimension_numbers = #tpu.dot_dimension_numbers<[2], [1], [1], [2], [0, 0, 0, 1, 1, 2], [0], [0]>} : vector<1x16x196xbf16>, vector<1x196x256xbf16>, vector<1x16x256xf32> -> vector<1x16x256xf32>
    "tpu.trace_stop"() : () -> ()
    %64 = vector.shape_cast %63 : vector<1x16x256xf32> to vector<16x256xf32>
    %65 = arith.mulf %59, %64 : vector<16x256xf32>
    %66 = arith.truncf %65 : vector<16x256xf32> to vector<16x256xbf16>
    %c0_35 = arith.constant 0 : index
    %c0_36 = arith.constant 0 : index
    %67 = vector.load %arg15[%c0_35, %c0_36] : memref<256x128xbf16, #tpu.memory_space<vmem>>, vector<256x128xbf16>
    %cst_37 = arith.constant dense<0.000000e+00> : vector<16x128xf32>
    %68 = tpu.matmul %66, %67, %cst_37 {dimension_numbers = #tpu.dot_dimension_numbers<[1], [0], [0], [1], [0, 0, 1, 1], [], []>} : vector<16x256xbf16>, vector<256x128xbf16>, vector<16x128xf32> -> vector<16x128xf32>
    %69 = arith.addf %32, %68 : vector<16x128xf32>
    %cst_38 = arith.constant 0.000000e+00 : f32
    %70 = vector.broadcast %cst_38 : f32 to vector<16x128xf32>
    %71 = arith.maximumf %69, %70 : vector<16x128xf32>
    %72 = arith.truncf %71 : vector<16x128xf32> to vector<16x128xbf16>
    %c0_39 = arith.constant 0 : index
    %c0_40 = arith.constant 0 : index
    %73 = vector.load %arg16[%c0_39, %c0_40] : memref<128x128xbf16, #tpu.memory_space<vmem>>, vector<128x128xbf16>
    %cst_41 = arith.constant dense<0.000000e+00> : vector<16x128xf32>
    %74 = tpu.matmul %72, %73, %cst_41 {dimension_numbers = #tpu.dot_dimension_numbers<[1], [0], [0], [1], [0, 0, 1, 1], [], []>} : vector<16x128xbf16>, vector<128x128xbf16>, vector<16x128xf32> -> vector<16x128xf32>
    %c0_42 = arith.constant 0 : index
    %c0_43 = arith.constant 0 : index
    %75 = vector.load %arg17[%c0_42, %c0_43] : memref<1x128xf32, #tpu.memory_space<vmem>>, vector<1x128xf32>
    %76 = vector.broadcast %75 : vector<1x128xf32> to vector<16x128xf32>
    %77 = arith.addf %74, %76 : vector<16x128xf32>
    %cst_44 = arith.constant 0.000000e+00 : f32
    %78 = vector.broadcast %cst_44 : f32 to vector<16x128xf32>
    %79 = arith.maximumf %77, %78 : vector<16x128xf32>
    %80 = arith.truncf %79 : vector<16x128xf32> to vector<16x128xbf16>
    %c0_45 = arith.constant 0 : index
    %c0_46 = arith.constant 0 : index
    %81 = vector.load %arg18[%c0_45, %c0_46] : memref<128x3xbf16, #tpu.memory_space<vmem>>, vector<128x3xbf16>
    %cst_47 = arith.constant dense<0.000000e+00> : vector<16x3xf32>
    %82 = tpu.matmul %80, %81, %cst_47 {dimension_numbers = #tpu.dot_dimension_numbers<[1], [0], [0], [1], [0, 0, 1, 1], [], []>} : vector<16x128xbf16>, vector<128x3xbf16>, vector<16x3xf32> -> vector<16x3xf32>
    %c0_48 = arith.constant 0 : index
    %c0_49 = arith.constant 0 : index
    %83 = vector.load %arg19[%c0_48, %c0_49] : memref<1x3xf32, #tpu.memory_space<vmem>>, vector<1x3xf32>
    %84 = vector.broadcast %83 : vector<1x3xf32> to vector<16x3xf32>
    %85 = arith.addf %82, %84 : vector<16x3xf32>
    %c0_50 = arith.constant 0 : index
    %c0_51 = arith.constant 0 : index
    %c0_52 = arith.constant 0 : index
    %86 = vector.load %arg3[%c0_50, %c0_51, %c0_52] : memref<1x16x3xf32, #tpu.memory_space<vmem>>, vector<1x16x3xf32>
    %87 = vector.shape_cast %86 : vector<1x16x3xf32> to vector<16x3xf32>
    %88 = arith.addf %85, %87 : vector<16x3xf32>
    %89 = arith.mulf %88, %88 : vector<16x3xf32>
    %cst_53 = arith.constant dense<0.000000e+00> : vector<16xf32>
    %90 = vector.multi_reduction <add>, %89, %cst_53 [1] : vector<16x3xf32> to vector<16xf32>
    %91 = vector.shape_cast %90 : vector<16xf32> to vector<16x1xf32>
    %cst_54 = arith.constant 1.000000e-24 : f32
    %92 = vector.broadcast %cst_54 : f32 to vector<16x1xf32>
    %93 = arith.maximumf %91, %92 : vector<16x1xf32>
    %94 = math.rsqrt %93 : vector<16x1xf32>
    %95 = vector.broadcast %94 : vector<16x1xf32> to vector<16x3xf32>
    %96 = arith.mulf %88, %95 : vector<16x3xf32>
    %97 = vector.shape_cast %96 : vector<16x3xf32> to vector<1x16x3xf32>
    %c0_55 = arith.constant 0 : index
    %c0_56 = arith.constant 0 : index
    %c0_57 = arith.constant 0 : index
    %98 = vector.load %arg20[%c0_55, %c0_56, %c0_57] : memref<1x16x3xf32, #tpu.memory_space<vmem>>, vector<1x16x3xf32>
    tpu.vector_store %arg20[%c0_55, %c0_56, %c0_57], %97 {strides = array<i32>} : memref<1x16x3xf32, #tpu.memory_space<vmem>>, vector<1x16x3xf32>,
    return
  }
  func.func @transform_0(%arg0: i32, %arg1: i32) -> (i32, i32, i32) {
    %c0_i32 = arith.constant 0 : i32
    %c0_i32_0 = arith.constant 0 : i32
    return %arg0, %arg1, %c0_i32 : i32, i32, i32
  }
  func.func @transform_1(%arg0: i32, %arg1: i32) -> (i32, i32, i32) {
    %c0_i32 = arith.constant 0 : i32
    %c0_i32_0 = arith.constant 0 : i32
    return %arg0, %arg1, %c0_i32 : i32, i32, i32
  }
  func.func @transform_2(%arg0: i32, %arg1: i32) -> (i32, i32, i32) {
    %c0_i32 = arith.constant 0 : i32
    %c0_i32_0 = arith.constant 0 : i32
    %c0_i32_1 = arith.constant 0 : i32
    return %arg0, %c0_i32, %c0_i32_0 : i32, i32, i32
  }
  func.func @transform_3(%arg0: i32, %arg1: i32) -> (i32, i32, i32) {
    %c0_i32 = arith.constant 0 : i32
    %c0_i32_0 = arith.constant 0 : i32
    %c0_i32_1 = arith.constant 0 : i32
    return %arg0, %c0_i32, %c0_i32_0 : i32, i32, i32
  }
  func.func @transform_4(%arg0: i32, %arg1: i32) -> (i32, i32, i32) {
    %c0_i32 = arith.constant 0 : i32
    %c0_i32_0 = arith.constant 0 : i32
    %c0_i32_1 = arith.constant 0 : i32
    return %arg0, %c0_i32, %c0_i32_0 : i32, i32, i32
  }
  func.func @transform_5(%arg0: i32, %arg1: i32) -> (i32, i32) {
    %c0_i32 = arith.constant 0 : i32
    %c0_i32_0 = arith.constant 0 : i32
    %c0_i32_1 = arith.constant 0 : i32
    return %c0_i32, %c0_i32_0 : i32, i32
  }
  func.func @transform_6(%arg0: i32, %arg1: i32) -> (i32, i32) {
    %c0_i32 = arith.constant 0 : i32
    %c0_i32_0 = arith.constant 0 : i32
    %c0_i32_1 = arith.constant 0 : i32
    return %c0_i32, %c0_i32_0 : i32, i32
  }
  func.func @transform_7(%arg0: i32, %arg1: i32) -> (i32, i32) {
    %c0_i32 = arith.constant 0 : i32
    %c0_i32_0 = arith.constant 0 : i32
    %c0_i32_1 = arith.constant 0 : i32
    return %c0_i32, %c0_i32_0 : i32, i32
  }
  func.func @transform_8(%arg0: i32, %arg1: i32) -> (i32, i32) {
    %c0_i32 = arith.constant 0 : i32
    %c0_i32_0 = arith.constant 0 : i32
    %c0_i32_1 = arith.constant 0 : i32
    return %c0_i32, %c0_i32_0 : i32, i32
  }
  func.func @transform_9(%arg0: i32, %arg1: i32) -> (i32, i32) {
    %c0_i32 = arith.constant 0 : i32
    %c0_i32_0 = arith.constant 0 : i32
    %c0_i32_1 = arith.constant 0 : i32
    return %c0_i32, %c0_i32_0 : i32, i32
  }
  func.func @transform_10(%arg0: i32, %arg1: i32) -> (i32, i32) {
    %c0_i32 = arith.constant 0 : i32
    %c0_i32_0 = arith.constant 0 : i32
    %c0_i32_1 = arith.constant 0 : i32
    return %c0_i32, %c0_i32_0 : i32, i32
  }
  func.func @transform_11(%arg0: i32, %arg1: i32) -> (i32, i32) {
    %c0_i32 = arith.constant 0 : i32
    %c0_i32_0 = arith.constant 0 : i32
    %c0_i32_1 = arith.constant 0 : i32
    return %c0_i32, %c0_i32_0 : i32, i32
  }
  func.func @transform_12(%arg0: i32, %arg1: i32) -> (i32, i32) {
    %c0_i32 = arith.constant 0 : i32
    %c0_i32_0 = arith.constant 0 : i32
    %c0_i32_1 = arith.constant 0 : i32
    return %c0_i32, %c0_i32_0 : i32, i32
  }
  func.func @transform_13(%arg0: i32, %arg1: i32) -> (i32, i32) {
    %c0_i32 = arith.constant 0 : i32
    %c0_i32_0 = arith.constant 0 : i32
    %c0_i32_1 = arith.constant 0 : i32
    return %c0_i32, %c0_i32_0 : i32, i32
  }
  func.func @transform_14(%arg0: i32, %arg1: i32) -> (i32, i32) {
    %c0_i32 = arith.constant 0 : i32
    %c0_i32_0 = arith.constant 0 : i32
    %c0_i32_1 = arith.constant 0 : i32
    return %c0_i32, %c0_i32_0 : i32, i32
  }
  func.func @transform_15(%arg0: i32, %arg1: i32) -> (i32, i32) {
    %c0_i32 = arith.constant 0 : i32
    %c0_i32_0 = arith.constant 0 : i32
    %c0_i32_1 = arith.constant 0 : i32
    return %c0_i32, %c0_i32_0 : i32, i32
  }
  func.func @transform_16(%arg0: i32, %arg1: i32) -> (i32, i32) {
    %c0_i32 = arith.constant 0 : i32
    %c0_i32_0 = arith.constant 0 : i32
    %c0_i32_1 = arith.constant 0 : i32
    return %c0_i32, %c0_i32_0 : i32, i32
  }
  func.func @transform_17(%arg0: i32, %arg1: i32) -> (i32, i32) {
    %c0_i32 = arith.constant 0 : i32
    %c0_i32_0 = arith.constant 0 : i32
    %c0_i32_1 = arith.constant 0 : i32
    return %c0_i32, %c0_i32_0 : i32, i32
  }
  func.func @transform_18(%arg0: i32, %arg1: i32) -> (i32, i32, i32) {
    %c0_i32 = arith.constant 0 : i32
    %c0_i32_0 = arith.constant 0 : i32
    return %arg0, %arg1, %c0_i32 : i32, i32, i32
  }
}

</mosaic_0001>

<llo_original>
// kernel: tpu_custom_call.1
$region0: #{tpu_custom_call.1}
  #allocation0 [shape = 'u32[]', space=smem, size = 0x4, offset = 0x4, fixed_abs, tag = 'smem constant byte address 0x4 - core index']
  #allocation1 [shape = 'u32[144,128]{1,0:T(1,128)}', space=vmem, size = 0x12000, scoped, tag = 'internal scratch']
  %s0 = inlined_call_operand.vmem [shape: bf16[2,16,17], index: 0, kind: input, shape index: {}]
  %s1 = inlined_call_operand.vmem [shape: f32[2,16,3], index: 1, kind: input, shape index: {}]
  %s2 = inlined_call_operand.vmem [shape: bf16[2,196,256], index: 2, kind: input, shape index: {}]
  %s3 = inlined_call_operand.vmem [shape: f32[2,1,128], index: 3, kind: input, shape index: {}]
  %s4 = inlined_call_operand.vmem [shape: f32[2,1,128], index: 4, kind: input, shape index: {}]
  %s5 = inlined_call_operand.vmem [shape: bf16[17,384], index: 5, kind: input, shape index: {}]
  %s6 = inlined_call_operand.vmem [shape: f32[1,128], index: 6, kind: input, shape index: {}]
  %s7 = inlined_call_operand.vmem [shape: f32[1,128], index: 7, kind: input, shape index: {}]
  %s8 = inlined_call_operand.vmem [shape: f32[1,128], index: 8, kind: input, shape index: {}]
  %s9 = inlined_call_operand.vmem [shape: bf16[128,196], index: 9, kind: input, shape index: {}]
  %s10 = inlined_call_operand.vmem [shape: f32[1,196], index: 10, kind: input, shape index: {}]
  %s11 = inlined_call_operand.vmem [shape: bf16[128,256], index: 11, kind: input, shape index: {}]
  %s12 = inlined_call_operand.vmem [shape: f32[1,256], index: 12, kind: input, shape index: {}]
  %s13 = inlined_call_operand.vmem [shape: bf16[256,128], index: 13, kind: input, shape index: {}]
  %s14 = inlined_call_operand.vmem [shape: bf16[128,128], index: 14, kind: input, shape index: {}]
  %s15 = inlined_call_operand.vmem [shape: f32[1,128], index: 15, kind: input, shape index: {}]
  %s16 = inlined_call_operand.vmem [shape: bf16[128,3], index: 16, kind: input, shape index: {}]
  %s17 = inlined_call_operand.vmem [shape: f32[1,3], index: 17, kind: input, shape index: {}]
  %s18 = inlined_call_operand.vmem [shape: f32[2,16,3], index: 18, kind: output, shape index: {}]
  %s19 = sld [smem:[#allocation0]]
  $region105: #{tpu_custom_call.1} parent=0
    _
  %s21 = ssub.s32 1, %s19
  %s22 = scalar_select 0, %s21, %s19
  loop: start=0, step=1, limit=4
  $region2: #{tpu_custom_call.1} parent=0 // loop_pre_header
    _
  $region3: #{tpu_custom_call.1} parent=0 // loop_header
    %s24 = sphi 0, %s28
    %p25 = scmp.ge.s32.totalorder %s24, 4
    %s31 = sphi 0, %s43
    %s32 = sphi 0, %s39
    %s33 = sphi 0, %s31
    %s34 = sphi 0, %s32
    %s35 = sphi 0, %s33
    %s36 = sphi 0, %s34
    %s48 = sphi 0, %s50
    %s51 = sphi 0, %s48
    %s52 = sphi 0, %s51
    %s68 = sphi 0, %s52
    %s76 = sphi 0, %s78
    %s79 = sphi 0, %s76
    %s80 = sphi 0, %s79
    %s96 = sphi 0, %s80
    %s102 = sphi 0, %s104
    %s105 = sphi 0, %s102
    %s106 = sphi 0, %s105
    %s122 = sphi 0, %s106
    %s128 = sphi 0, %s130
    %s131 = sphi 0, %s128
    %s132 = sphi 0, %s131
    %s148 = sphi 0, %s132
    %s154 = sphi 0, %s156
    %s157 = sphi 0, %s154
    %s158 = sphi 0, %s157
    %s174 = sphi 0, %s158
    %s178 = sphi 0, %s178
    %s180 = sphi 0, %s178
    %s181 = sphi 0, %s180
    %s195 = sphi 0, %s181
    %s199 = sphi 0, %s199
    %s201 = sphi 0, %s199
    %s202 = sphi 0, %s201
    %s216 = sphi 0, %s202
    %s220 = sphi 0, %s220
    %s222 = sphi 0, %s220
    %s223 = sphi 0, %s222
    %s237 = sphi 0, %s223
    %s241 = sphi 0, %s241
    %s243 = sphi 0, %s241
    %s244 = sphi 0, %s243
    %s258 = sphi 0, %s244
    %s262 = sphi 0, %s262
    %s264 = sphi 0, %s262
    %s265 = sphi 0, %s264
    %s279 = sphi 0, %s265
    %s283 = sphi 0, %s283
    %s285 = sphi 0, %s283
    %s286 = sphi 0, %s285
    %s300 = sphi 0, %s286
    %s304 = sphi 0, %s304
    %s306 = sphi 0, %s304
    %s307 = sphi 0, %s306
    %s321 = sphi 0, %s307
    %s325 = sphi 0, %s325
    %s327 = sphi 0, %s325
    %s328 = sphi 0, %s327
    %s342 = sphi 0, %s328
    %s346 = sphi 0, %s346
    %s348 = sphi 0, %s346
    %s349 = sphi 0, %s348
    %s363 = sphi 0, %s349
    %s367 = sphi 0, %s367
    %s369 = sphi 0, %s367
    %s370 = sphi 0, %s369
    %s384 = sphi 0, %s370
    %s388 = sphi 0, %s388
    %s390 = sphi 0, %s388
    %s391 = sphi 0, %s390
    %s405 = sphi 0, %s391
    %s409 = sphi 0, %s409
    %s411 = sphi 0, %s409
    %s412 = sphi 0, %s411
    %s426 = sphi 0, %s412
    %s430 = sphi 0, %s430
    %s432 = sphi 0, %s430
    %s433 = sphi 0, %s432
    %s447 = sphi 0, %s433
    %s455 = sphi 0, %s457
    %s458 = sphi 0, %s455
    %s459 = sphi 0, %s458
    %s475 = sphi 0, %s459
  $region4: #{tpu_custom_call.1} parent=0 // loop_header_branch
    %27 = sbr.rel (%p25) target = $region8
  $region5: #{tpu_custom_call.1} parent=0 // loop_body
    %s29 = ssub.s32 %s24, 1
    %s30 = ssub.s32 %s24, 2
    %s37 = sadd.s32 1, %s32
    %p38 = scmp.ge.s32.totalorder %s37, 1
    %s39 = scalar_select %p38, 0, %s37
    %s40 = sadd.s32 1, %s31
    %s41 = scalar_select %p38, %s40, %s31
    %p42 = scmp.ge.s32.totalorder %s41, 2
    %s43 = scalar_select %p42, 0, %s41
    %s44 = ssub.s32 %s31, %s43
    %s45 = ssub.s32 %s32, %s39
    %s46 = sor.u32 %s44, %s45
    %p47 = scmp.eq.s32.totalorder %s46, 0
    %s49 = sadd.s32 %s48, 1
    %s50 = scalar_select %p47, %s48, %s49
    %p53 = pneg %p47
    %p54 = scmp.eq.s32.totalorder %s24, 1
    %p55 = por %p53, %p54
    %p56 = scmp.ne.s32.totalorder %s48, %s51
    %p57 = scmp.eq.s32.totalorder %s24, 0
    %p58 = por %p56, %p57
    %p59 = scmp.ne.s32.totalorder %s48, %s51
    %p60 = scmp.eq.s32.totalorder %s29, 1
    %p61 = por %p59, %p60
    %p62 = scmp.ne.s32.totalorder %s51, %s52
    %p63 = scmp.eq.s32.totalorder %s29, 0
    %p64 = por %p62, %p63
    %p65 = scmp.ne.s32.totalorder %s51, %s52
    %p66 = scmp.eq.s32.totalorder %s30, 1
    %p67 = por %p65, %p66
    %p69 = scmp.ne.s32.totalorder %s52, %s68
    %p70 = scmp.eq.s32.totalorder %s30, 0
    %p71 = por %p69, %p70
    %s72 = ssub.s32 %s31, %s43
    %s73 = ssub.s32 %s32, %s39
    %s74 = sor.u32 %s72, %s73
    %p75 = scmp.eq.s32.totalorder %s74, 0
    %s77 = sadd.s32 %s76, 1
    %s78 = scalar_select %p75, %s76, %s77
    %p81 = pneg %p75
    %p82 = scmp.eq.s32.totalorder %s24, 1
    %p83 = por %p81, %p82
    %p84 = scmp.ne.s32.totalorder %s76, %s79
    %p85 = scmp.eq.s32.totalorder %s24, 0
    %p86 = por %p84, %p85
    %p87 = scmp.ne.s32.totalorder %s76, %s79
    %p88 = scmp.eq.s32.totalorder %s29, 1
    %p89 = por %p87, %p88
    %p90 = scmp.ne.s32.totalorder %s79, %s80
    %p91 = scmp.eq.s32.totalorder %s29, 0
    %p92 = por %p90, %p91
    %p93 = scmp.ne.s32.totalorder %s79, %s80
    %p94 = scmp.eq.s32.totalorder %s30, 1
    %p95 = por %p93, %p94
    %p97 = scmp.ne.s32.totalorder %s80, %s96
    %p98 = scmp.eq.s32.totalorder %s30, 0
    %p99 = por %p97, %p98
    %s100 = ssub.s32 %s31, %s43
    %p101 = scmp.eq.s32.totalorder %s100, 0
    %s103 = sadd.s32 %s102, 1
    %s104 = scalar_select %p101, %s102, %s103
    %p107 = pneg %p101
    %p108 = scmp.eq.s32.totalorder %s24, 1
    %p109 = por %p107, %p108
    %p110 = scmp.ne.s32.totalorder %s102, %s105
    %p111 = scmp.eq.s32.totalorder %s24, 0
    %p112 = por %p110, %p111
    %p113 = scmp.ne.s32.totalorder %s102, %s105
    %p114 = scmp.eq.s32.totalorder %s29, 1
    %p115 = por %p113, %p114
    %p116 = scmp.ne.s32.totalorder %s105, %s106
    %p117 = scmp.eq.s32.totalorder %s29, 0
    %p118 = por %p116, %p117
    %p119 = scmp.ne.s32.totalorder %s105, %s106
    %p120 = scmp.eq.s32.totalorder %s30, 1
    %p121 = por %p119, %p120
    %p123 = scmp.ne.s32.totalorder %s106, %s122
    %p124 = scmp.eq.s32.totalorder %s30, 0
    %p125 = por %p123, %p124
    %s126 = ssub.s32 %s31, %s43
    %p127 = scmp.eq.s32.totalorder %s126, 0
    %s129 = sadd.s32 %s128, 1
    %s130 = scalar_select %p127, %s128, %s129
    %p133 = pneg %p127
    %p134 = scmp.eq.s32.totalorder %s24, 1
    %p135 = por %p133, %p134
    %p136 = scmp.ne.s32.totalorder %s128, %s131
    %p137 = scmp.eq.s32.totalorder %s24, 0
    %p138 = por %p136, %p137
    %p139 = scmp.ne.s32.totalorder %s128, %s131
    %p140 = scmp.eq.s32.totalorder %s29, 1
    %p141 = por %p139, %p140
    %p142 = scmp.ne.s32.totalorder %s131, %s132
    %p143 = scmp.eq.s32.totalorder %s29, 0
    %p144 = por %p142, %p143
    %p145 = scmp.ne.s32.totalorder %s131, %s132
    %p146 = scmp.eq.s32.totalorder %s30, 1
    %p147 = por %p145, %p146
    %p149 = scmp.ne.s32.totalorder %s132, %s148
    %p150 = scmp.eq.s32.totalorder %s30, 0
    %p151 = por %p149, %p150
    %s152 = ssub.s32 %s31, %s43
    %p153 = scmp.eq.s32.totalorder %s152, 0
    %s155 = sadd.s32 %s154, 1
    %s156 = scalar_select %p153, %s154, %s155
    %p159 = pneg %p153
    %p160 = scmp.eq.s32.totalorder %s24, 1
    %p161 = por %p159, %p160
    %p162 = scmp.ne.s32.totalorder %s154, %s157
    %p163 = scmp.eq.s32.totalorder %s24, 0
    %p164 = por %p162, %p163
    %p165 = scmp.ne.s32.totalorder %s154, %s157
    %p166 = scmp.eq.s32.totalorder %s29, 1
    %p167 = por %p165, %p166
    %p168 = scmp.ne.s32.totalorder %s157, %s158
    %p169 = scmp.eq.s32.totalorder %s29, 0
    %p170 = por %p168, %p169
    %p171 = scmp.ne.s32.totalorder %s157, %s158
    %p172 = scmp.eq.s32.totalorder %s30, 1
    %p173 = por %p171, %p172
    %p175 = scmp.ne.s32.totalorder %s158, %s174
    %p176 = scmp.eq.s32.totalorder %s30, 0
    %p177 = por %p175, %p176
    %s179 = sadd.s32 %s178, 1
    %p182 = scmp.eq.s32.totalorder %s24, 1
    %p183 = scmp.ne.s32.totalorder %s178, %s180
    %p184 = scmp.eq.s32.totalorder %s24, 0
    %p185 = por %p183, %p184
    %p186 = scmp.ne.s32.totalorder %s178, %s180
    %p187 = scmp.eq.s32.totalorder %s29, 1
    %p188 = por %p186, %p187
    %p189 = scmp.ne.s32.totalorder %s180, %s181
    %p190 = scmp.eq.s32.totalorder %s29, 0
    %p191 = por %p189, %p190
    %p192 = scmp.ne.s32.totalorder %s180, %s181
    %p193 = scmp.eq.s32.totalorder %s30, 1
    %p194 = por %p192, %p193
    %p196 = scmp.ne.s32.totalorder %s181, %s195
    %p197 = scmp.eq.s32.totalorder %s30, 0
    %p198 = por %p196, %p197
    %s200 = sadd.s32 %s199, 1
    %p203 = scmp.eq.s32.totalorder %s24, 1
    %p204 = scmp.ne.s32.totalorder %s199, %s201
    %p205 = scmp.eq.s32.totalorder %s24, 0
    %p206 = por %p204, %p205
    %p207 = scmp.ne.s32.totalorder %s199, %s201
    %p208 = scmp.eq.s32.totalorder %s29, 1
    %p209 = por %p207, %p208
    %p210 = scmp.ne.s32.totalorder %s201, %s202
    %p211 = scmp.eq.s32.totalorder %s29, 0
    %p212 = por %p210, %p211
    %p213 = scmp.ne.s32.totalorder %s201, %s202
    %p214 = scmp.eq.s32.totalorder %s30, 1
    %p215 = por %p213, %p214
    %p217 = scmp.ne.s32.totalorder %s202, %s216
    %p218 = scmp.eq.s32.totalorder %s30, 0
    %p219 = por %p217, %p218
    %s221 = sadd.s32 %s220, 1
    %p224 = scmp.eq.s32.totalorder %s24, 1
    %p225 = scmp.ne.s32.totalorder %s220, %s222
    %p226 = scmp.eq.s32.totalorder %s24, 0
    %p227 = por %p225, %p226
    %p228 = scmp.ne.s32.totalorder %s220, %s222
    %p229 = scmp.eq.s32.totalorder %s29, 1
    %p230 = por %p228, %p229
    %p231 = scmp.ne.s32.totalorder %s222, %s223
    %p232 = scmp.eq.s32.totalorder %s29, 0
    %p233 = por %p231, %p232
    %p234 = scmp.ne.s32.totalorder %s222, %s223
    %p235 = scmp.eq.s32.totalorder %s30, 1
    %p236 = por %p234, %p235
    %p238 = scmp.ne.s32.totalorder %s223, %s237
    %p239 = scmp.eq.s32.totalorder %s30, 0
    %p240 = por %p238, %p239
    %s242 = sadd.s32 %s241, 1
    %p245 = scmp.eq.s32.totalorder %s24, 1
    %p246 = scmp.ne.s32.totalorder %s241, %s243
    %p247 = scmp.eq.s32.totalorder %s24, 0
    %p248 = por %p246, %p247
    %p249 = scmp.ne.s32.totalorder %s241, %s243
    %p250 = scmp.eq.s32.totalorder %s29, 1
    %p251 = por %p249, %p250
    %p252 = scmp.ne.s32.totalorder %s243, %s244
    %p253 = scmp.eq.s32.totalorder %s29, 0
    %p254 = por %p252, %p253
    %p255 = scmp.ne.s32.totalorder %s243, %s244
    %p256 = scmp.eq.s32.totalorder %s30, 1
    %p257 = por %p255, %p256
    %p259 = scmp.ne.s32.totalorder %s244, %s258
    %p260 = scmp.eq.s32.totalorder %s30, 0
    %p261 = por %p259, %p260
    %s263 = sadd.s32 %s262, 1
    %p266 = scmp.eq.s32.totalorder %s24, 1
    %p267 = scmp.ne.s32.totalorder %s262, %s264
    %p268 = scmp.eq.s32.totalorder %s24, 0
    %p269 = por %p267, %p268
    %p270 = scmp.ne.s32.totalorder %s262, %s264
    %p271 = scmp.eq.s32.totalorder %s29, 1
    %p272 = por %p270, %p271
    %p273 = scmp.ne.s32.totalorder %s264, %s265
    %p274 = scmp.eq.s32.totalorder %s29, 0
    %p275 = por %p273, %p274
    %p276 = scmp.ne.s32.totalorder %s264, %s265
    %p277 = scmp.eq.s32.totalorder %s30, 1
    %p278 = por %p276, %p277
    %p280 = scmp.ne.s32.totalorder %s265, %s279
    %p281 = scmp.eq.s32.totalorder %s30, 0
    %p282 = por %p280, %p281
    %s284 = sadd.s32 %s283, 1
    %p287 = scmp.eq.s32.totalorder %s24, 1
    %p288 = scmp.ne.s32.totalorder %s283, %s285
    %p289 = scmp.eq.s32.totalorder %s24, 0
    %p290 = por %p288, %p289
    %p291 = scmp.ne.s32.totalorder %s283, %s285
    %p292 = scmp.eq.s32.totalorder %s29, 1
    %p293 = por %p291, %p292
    %p294 = scmp.ne.s32.totalorder %s285, %s286
    %p295 = scmp.eq.s32.totalorder %s29, 0
    %p296 = por %p294, %p295
    %p297 = scmp.ne.s32.totalorder %s285, %s286
    %p298 = scmp.eq.s32.totalorder %s30, 1
    %p299 = por %p297, %p298
    %p301 = scmp.ne.s32.totalorder %s286, %s300
    %p302 = scmp.eq.s32.totalorder %s30, 0
    %p303 = por %p301, %p302
    %s305 = sadd.s32 %s304, 1
    %p308 = scmp.eq.s32.totalorder %s24, 1
    %p309 = scmp.ne.s32.totalorder %s304, %s306
    %p310 = scmp.eq.s32.totalorder %s24, 0
    %p311 = por %p309, %p310
    %p312 = scmp.ne.s32.totalorder %s304, %s306
    %p313 = scmp.eq.s32.totalorder %s29, 1
    %p314 = por %p312, %p313
    %p315 = scmp.ne.s32.totalorder %s306, %s307
    %p316 = scmp.eq.s32.totalorder %s29, 0
    %p317 = por %p315, %p316
    %p318 = scmp.ne.s32.totalorder %s306, %s307
    %p319 = scmp.eq.s32.totalorder %s30, 1
    %p320 = por %p318, %p319
    %p322 = scmp.ne.s32.totalorder %s307, %s321
    %p323 = scmp.eq.s32.totalorder %s30, 0
    %p324 = por %p322, %p323
    %s326 = sadd.s32 %s325, 1
    %p329 = scmp.eq.s32.totalorder %s24, 1
    %p330 = scmp.ne.s32.totalorder %s325, %s327
    %p331 = scmp.eq.s32.totalorder %s24, 0
    %p332 = por %p330, %p331
    %p333 = scmp.ne.s32.totalorder %s325, %s327
    %p334 = scmp.eq.s32.totalorder %s29, 1
    %p335 = por %p333, %p334
    %p336 = scmp.ne.s32.totalorder %s327, %s328
    %p337 = scmp.eq.s32.totalorder %s29, 0
    %p338 = por %p336, %p337
    %p339 = scmp.ne.s32.totalorder %s327, %s328
    %p340 = scmp.eq.s32.totalorder %s30, 1
    %p341 = por %p339, %p340
    %p343 = scmp.ne.s32.totalorder %s328, %s342
    %p344 = scmp.eq.s32.totalorder %s30, 0
    %p345 = por %p343, %p344
    %s347 = sadd.s32 %s346, 1
    %p350 = scmp.eq.s32.totalorder %s24, 1
    %p351 = scmp.ne.s32.totalorder %s346, %s348
    %p352 = scmp.eq.s32.totalorder %s24, 0
    %p353 = por %p351, %p352
    %p354 = scmp.ne.s32.totalorder %s346, %s348
    %p355 = scmp.eq.s32.totalorder %s29, 1
    %p356 = por %p354, %p355
    %p357 = scmp.ne.s32.totalorder %s348, %s349
    %p358 = scmp.eq.s32.totalorder %s29, 0
    %p359 = por %p357, %p358
    %p360 = scmp.ne.s32.totalorder %s348, %s349
    %p361 = scmp.eq.s32.totalorder %s30, 1
    %p362 = por %p360, %p361
    %p364 = scmp.ne.s32.totalorder %s349, %s363
    %p365 = scmp.eq.s32.totalorder %s30, 0
    %p366 = por %p364, %p365
    %s368 = sadd.s32 %s367, 1
    %p371 = scmp.eq.s32.totalorder %s24, 1
    %p372 = scmp.ne.s32.totalorder %s367, %s369
    %p373 = scmp.eq.s32.totalorder %s24, 0
    %p374 = por %p372, %p373
    %p375 = scmp.ne.s32.totalorder %s367, %s369
    %p376 = scmp.eq.s32.totalorder %s29, 1
    %p377 = por %p375, %p376
    %p378 = scmp.ne.s32.totalorder %s369, %s370
    %p379 = scmp.eq.s32.totalorder %s29, 0
    %p380 = por %p378, %p379
    %p381 = scmp.ne.s32.totalorder %s369, %s370
    %p382 = scmp.eq.s32.totalorder %s30, 1
    %p383 = por %p381, %p382
    %p385 = scmp.ne.s32.totalorder %s370, %s384
    %p386 = scmp.eq.s32.totalorder %s30, 0
    %p387 = por %p385, %p386
    %s389 = sadd.s32 %s388, 1
    %p392 = scmp.eq.s32.totalorder %s24, 1
    %p393 = scmp.ne.s32.totalorder %s388, %s390
    %p394 = scmp.eq.s32.totalorder %s24, 0
    %p395 = por %p393, %p394
    %p396 = scmp.ne.s32.totalorder %s388, %s390
    %p397 = scmp.eq.s32.totalorder %s29, 1
    %p398 = por %p396, %p397
    %p399 = scmp.ne.s32.totalorder %s390, %s391
    %p400 = scmp.eq.s32.totalorder %s29, 0
    %p401 = por %p399, %p400
    %p402 = scmp.ne.s32.totalorder %s390, %s391
    %p403 = scmp.eq.s32.totalorder %s30, 1
    %p404 = por %p402, %p403
    %p406 = scmp.ne.s32.totalorder %s391, %s405
    %p407 = scmp.eq.s32.totalorder %s30, 0
    %p408 = por %p406, %p407
    %s410 = sadd.s32 %s409, 1
    %p413 = scmp.eq.s32.totalorder %s24, 1
    %p414 = scmp.ne.s32.totalorder %s409, %s411
    %p415 = scmp.eq.s32.totalorder %s24, 0
    %p416 = por %p414, %p415
    %p417 = scmp.ne.s32.totalorder %s409, %s411
    %p418 = scmp.eq.s32.totalorder %s29, 1
    %p419 = por %p417, %p418
    %p420 = scmp.ne.s32.totalorder %s411, %s412
    %p421 = scmp.eq.s32.totalorder %s29, 0
    %p422 = por %p420, %p421
    %p423 = scmp.ne.s32.totalorder %s411, %s412
    %p424 = scmp.eq.s32.totalorder %s30, 1
    %p425 = por %p423, %p424
    %p427 = scmp.ne.s32.totalorder %s412, %s426
    %p428 = scmp.eq.s32.totalorder %s30, 0
    %p429 = por %p427, %p428
    %s431 = sadd.s32 %s430, 1
    %p434 = scmp.eq.s32.totalorder %s24, 1
    %p435 = scmp.ne.s32.totalorder %s430, %s432
    %p436 = scmp.eq.s32.totalorder %s24, 0
    %p437 = por %p435, %p436
    %p438 = scmp.ne.s32.totalorder %s430, %s432
    %p439 = scmp.eq.s32.totalorder %s29, 1
    %p440 = por %p438, %p439
    %p441 = scmp.ne.s32.totalorder %s432, %s433
    %p442 = scmp.eq.s32.totalorder %s29, 0
    %p443 = por %p441, %p442
    %p444 = scmp.ne.s32.totalorder %s432, %s433
    %p445 = scmp.eq.s32.totalorder %s30, 1
    %p446 = por %p444, %p445
    %p448 = scmp.ne.s32.totalorder %s433, %s447
    %p449 = scmp.eq.s32.totalorder %s30, 0
    %p450 = por %p448, %p449
    %s451 = ssub.s32 %s31, %s43
    %s452 = ssub.s32 %s32, %s39
    %s453 = sor.u32 %s451, %s452
    %p454 = scmp.eq.s32.totalorder %s453, 0
    %s456 = sadd.s32 %s455, 1
    %s457 = scalar_select %p454, %s455, %s456
    %p460 = pneg %p454
    %p461 = scmp.eq.s32.totalorder %s24, 1
    %p462 = por %p460, %p461
    %p463 = scmp.ne.s32.totalorder %s455, %s458
    %p464 = scmp.eq.s32.totalorder %s24, 0
    %p465 = por %p463, %p464
    %p466 = scmp.ne.s32.totalorder %s455, %s458
    %p467 = scmp.eq.s32.totalorder %s29, 1
    %p468 = por %p466, %p467
    %p469 = scmp.ne.s32.totalorder %s458, %s459
    %p470 = scmp.eq.s32.totalorder %s29, 0
    %p471 = por %p469, %p470
    %p472 = scmp.ne.s32.totalorder %s458, %s459
    %p473 = scmp.eq.s32.totalorder %s30, 1
    %p474 = por %p472, %p473
    %p476 = scmp.ne.s32.totalorder %s459, %s475
    %p477 = scmp.eq.s32.totalorder %s30, 0
    %p478 = por %p476, %p477
    %p479 = scmp.le.s32.totalorder 1, %s24
    %p480 = scmp.lt.s32.totalorder %s24, 3
    %p481 = pnand %p479, %p480
    %p482 = pneg %p481
    // Predicated region
    $region9: #{tpu_custom_call.1} parent=5 // pred_check
      _
    $region10: #{tpu_custom_call.1} parent=5 // pred_check_branch
      %484 = sbr.rel (%p481) target = $region12
    $region11: #{tpu_custom_call.1} parent=5 // pred_region
      %s485 = ssub.s32 %s24, 1
      // Predicated region
      $region13: #{tpu_custom_call.1} parent=11 // pred_check
        %p486 = pneg %p191
      $region14: #{tpu_custom_call.1} parent=11 // pred_check_branch
        %488 = sbr.rel (%p486) target = $region16
      $region15: #{tpu_custom_call.1} parent=11 // pred_region
        _
      $region16: #{tpu_custom_call.1} parent=11 // pred_fallthru
        _
      // Predicated region
      $region17: #{tpu_custom_call.1} parent=11 // pred_check
        %p489 = pneg %p212
      $region18: #{tpu_custom_call.1} parent=11 // pred_check_branch
        %491 = sbr.rel (%p489) target = $region20
      $region19: #{tpu_custom_call.1} parent=11 // pred_region
        _
      $region20: #{tpu_custom_call.1} parent=11 // pred_fallthru
        _
      // Predicated region
      $region21: #{tpu_custom_call.1} parent=11 // pred_check
        %p492 = pneg %p233
      $region22: #{tpu_custom_call.1} parent=11 // pred_check_branch
        %494 = sbr.rel (%p492) target = $region24
      $region23: #{tpu_custom_call.1} parent=11 // pred_region
        _
      $region24: #{tpu_custom_call.1} parent=11 // pred_fallthru
        _
      // Predicated region
      $region25: #{tpu_custom_call.1} parent=11 // pred_check
        %p495 = pneg %p254
      $region26: #{tpu_custom_call.1} parent=11 // pred_check_branch
        %497 = sbr.rel (%p495) target = $region28
      $region27: #{tpu_custom_call.1} parent=11 // pred_region
        _
      $region28: #{tpu_custom_call.1} parent=11 // pred_fallthru
        _
      // Predicated region
      $region29: #{tpu_custom_call.1} parent=11 // pred_check
        %p498 = pneg %p275
      $region30: #{tpu_custom_call.1} parent=11 // pred_check_branch
        %500 = sbr.rel (%p498) target = $region32
      $region31: #{tpu_custom_call.1} parent=11 // pred_region
        _
      $region32: #{tpu_custom_call.1} parent=11 // pred_fallthru
        _
      // Predicated region
      $region33: #{tpu_custom_call.1} parent=11 // pred_check
        %p501 = pneg %p296
      $region34: #{tpu_custom_call.1} parent=11 // pred_check_branch
        %503 = sbr.rel (%p501) target = $region36
      $region35: #{tpu_custom_call.1} parent=11 // pred_region
        _
      $region36: #{tpu_custom_call.1} parent=11 // pred_fallthru
        _
      // Predicated region
      $region37: #{tpu_custom_call.1} parent=11 // pred_check
        %p504 = pneg %p317
      $region38: #{tpu_custom_call.1} parent=11 // pred_check_branch
        %506 = sbr.rel (%p504) target = $region40
      $region39: #{tpu_custom_call.1} parent=11 // pred_region
        _
      $region40: #{tpu_custom_call.1} parent=11 // pred_fallthru
        _
      // Predicated region
      $region41: #{tpu_custom_call.1} parent=11 // pred_check
        %p507 = pneg %p338
      $region42: #{tpu_custom_call.1} parent=11 // pred_check_branch
        %509 = sbr.rel (%p507) target = $region44
      $region43: #{tpu_custom_call.1} parent=11 // pred_region
        _
      $region44: #{tpu_custom_call.1} parent=11 // pred_fallthru
        _
      // Predicated region
      $region45: #{tpu_custom_call.1} parent=11 // pred_check
        %p510 = pneg %p359
      $region46: #{tpu_custom_call.1} parent=11 // pred_check_branch
        %512 = sbr.rel (%p510) target = $region48
      $region47: #{tpu_custom_call.1} parent=11 // pred_region
        _
      $region48: #{tpu_custom_call.1} parent=11 // pred_fallthru
        _
      // Predicated region
      $region49: #{tpu_custom_call.1} parent=11 // pred_check
        %p513 = pneg %p380
      $region50: #{tpu_custom_call.1} parent=11 // pred_check_branch
        %515 = sbr.rel (%p513) target = $region52
      $region51: #{tpu_custom_call.1} parent=11 // pred_region
        _
      $region52: #{tpu_custom_call.1} parent=11 // pred_fallthru
        _
      // Predicated region
      $region53: #{tpu_custom_call.1} parent=11 // pred_check
        %p516 = pneg %p401
      $region54: #{tpu_custom_call.1} parent=11 // pred_check_branch
        %518 = sbr.rel (%p516) target = $region56
      $region55: #{tpu_custom_call.1} parent=11 // pred_region
        _
      $region56: #{tpu_custom_call.1} parent=11 // pred_fallthru
        _
      // Predicated region
      $region57: #{tpu_custom_call.1} parent=11 // pred_check
        %p519 = pneg %p422
      $region58: #{tpu_custom_call.1} parent=11 // pred_check_branch
        %521 = sbr.rel (%p519) target = $region60
      $region59: #{tpu_custom_call.1} parent=11 // pred_region
        _
      $region60: #{tpu_custom_call.1} parent=11 // pred_fallthru
        _
      // Predicated region
      $region61: #{tpu_custom_call.1} parent=11 // pred_check
        %p522 = pneg %p443
      $region62: #{tpu_custom_call.1} parent=11 // pred_check_branch
        %524 = sbr.rel (%p522) target = $region64
      $region63: #{tpu_custom_call.1} parent=11 // pred_region
        _
      $region64: #{tpu_custom_call.1} parent=11 // pred_fallthru
        _
    $region12: #{tpu_custom_call.1} parent=5 // pred_fallthru
      _
    %p525 = scmp.lt.s32.totalorder %s24, 2
    // Predicated region
    $region65: #{tpu_custom_call.1} parent=5 // pred_check
      %p526 = pneg %p525
    $region66: #{tpu_custom_call.1} parent=5 // pred_check_branch
      %528 = sbr.rel (%p526) target = $region68
    $region67: #{tpu_custom_call.1} parent=5 // pred_region
      // Predicated region
      $region69: #{tpu_custom_call.1} parent=67 // pred_check
        %p529 = pneg %p58
      $region70: #{tpu_custom_call.1} parent=67 // pred_check_branch
        %531 = sbr.rel (%p529) target = $region72
      $region71: #{tpu_custom_call.1} parent=67 // pred_region
        %s532 = smul.u32 2, %s32
        %p533 = scmp.lt.s32.totalorder %s31, 1
        %s534 = scalar_select %p533, %s31, 1
        %p535 = scmp.lt.s32.totalorder %s532, 1
        %s536 = scalar_select %p535, %s532, 1
        %s537 = smul.addr %s534, 2
        %s538 = sadd.s32 %s536, %s537
        %s539 = smul.addr %s538, 4
        %s540 = scalar_lea.vmem %s0, %s539
        %s541 = smul.u32 2, %s32
      $region72: #{tpu_custom_call.1} parent=67 // pred_fallthru
        _
      // Predicated region
      $region73: #{tpu_custom_call.1} parent=67 // pred_check
        %p542 = pneg %p86
      $region74: #{tpu_custom_call.1} parent=67 // pred_check_branch
        %544 = sbr.rel (%p542) target = $region76
      $region75: #{tpu_custom_call.1} parent=67 // pred_region
        %s545 = smul.u32 2, %s32
        %p546 = scmp.lt.s32.totalorder %s31, 1
        %s547 = scalar_select %p546, %s31, 1
        %p548 = scmp.lt.s32.totalorder %s545, 1
        %s549 = scalar_select %p548, %s545, 1
        %s550 = smul.addr %s547, 2
        %s551 = sadd.s32 %s549, %s550
        %s552 = smul.addr %s551, 8
        %s553 = scalar_lea.vmem %s1, %s552
        %s554 = smul.u32 2, %s32
      $region76: #{tpu_custom_call.1} parent=67 // pred_fallthru
        _
      // Predicated region
      $region77: #{tpu_custom_call.1} parent=67 // pred_check
        %p555 = pneg %p112
      $region78: #{tpu_custom_call.1} parent=67 // pred_check_branch
        %557 = sbr.rel (%p555) target = $region80
      $region79: #{tpu_custom_call.1} parent=67 // pred_region
        %p558 = scmp.lt.s32.totalorder %s31, 1
        %s559 = scalar_select %p558, %s31, 1
        %s560 = smul.addr %s559, 50
        %s561 = smul.addr %s560, 4
        %s562 = scalar_lea.vmem %s2, %s561
      $region80: #{tpu_custom_call.1} parent=67 // pred_fallthru
        _
      // Predicated region
      $region81: #{tpu_custom_call.1} parent=67 // pred_check
        %p563 = pneg %p138
      $region82: #{tpu_custom_call.1} parent=67 // pred_check_branch
        %565 = sbr.rel (%p563) target = $region84
      $region83: #{tpu_custom_call.1} parent=67 // pred_region
        %p566 = scmp.lt.s32.totalorder %s31, 1
        %s567 = scalar_select %p566, %s31, 1
        %s568 = scalar_lea.vmem %s3, %s567
      $region84: #{tpu_custom_call.1} parent=67 // pred_fallthru
        _
      // Predicated region
      $region85: #{tpu_custom_call.1} parent=67 // pred_check
        %p569 = pneg %p164
      $region86: #{tpu_custom_call.1} parent=67 // pred_check_branch
        %571 = sbr.rel (%p569) target = $region88
      $region87: #{tpu_custom_call.1} parent=67 // pred_region
        %p572 = scmp.lt.s32.totalorder %s31, 1
        %s573 = scalar_select %p572, %s31, 1
        %s574 = scalar_lea.vmem %s4, %s573
      $region88: #{tpu_custom_call.1} parent=67 // pred_fallthru
        _
    $region68: #{tpu_custom_call.1} parent=5 // pred_fallthru
      _
    %p575 = scmp.le.s32.totalorder 1, %s24
    %p576 = scmp.lt.s32.totalorder %s24, 3
    %p577 = pnand %p575, %p576
    %p578 = pneg %p577
    // Predicated region
    $region89: #{tpu_custom_call.1} parent=5 // pred_check
      _
    $region90: #{tpu_custom_call.1} parent=5 // pred_check_branch
      %580 = sbr.rel (%p577) target = $region92
    $region91: #{tpu_custom_call.1} parent=5 // pred_region
      %s581 = ssub.s32 %s24, 1
      %s582 = smul.u32 2, %s34
      %p583 = scmp.lt.s32.totalorder %s33, 1
      %s584 = scalar_select %p583, %s33, 1
      %p585 = scmp.lt.s32.totalorder %s582, 1
      %s586 = scalar_select %p585, %s582, 1
      %s587 = smul.addr %s584, 2
      %s588 = sadd.s32 %s586, %s587
      %s589 = smul.addr %s588, 4
      %s590 = scalar_lea.vmem %s0, %s589
      %p591 = pneg %p64
      %p592 = pneg %p61
      %s593 = smul.u32 2, %s34
      %p594 = scmp.lt.s32.totalorder %s33, 1
      %s595 = scalar_select %p594, %s33, 1
      %p596 = scmp.lt.s32.totalorder %s593, 1
      %s597 = scalar_select %p596, %s593, 1
      %s598 = smul.addr %s595, 2
      %s599 = sadd.s32 %s597, %s598
      %s600 = smul.addr %s599, 8
      %s601 = scalar_lea.vmem %s1, %s600
      %p602 = pneg %p92
      %p603 = pneg %p89
      %p604 = scmp.lt.s32.totalorder %s33, 1
      %s605 = scalar_select %p604, %s33, 1
      %s606 = smul.addr %s605, 50
      %s607 = smul.addr %s606, 4
      %s608 = scalar_lea.vmem %s2, %s607
      %p609 = pneg %p118
      %p610 = pneg %p115
      %p611 = scmp.lt.s32.totalorder %s33, 1
      %s612 = scalar_select %p611, %s33, 1
      %s613 = scalar_lea.vmem %s3, %s612
      %p614 = pneg %p144
      %p615 = pneg %p141
      %p616 = scmp.lt.s32.totalorder %s33, 1
      %s617 = scalar_select %p616, %s33, 1
      %s618 = scalar_lea.vmem %s4, %s617
      %p619 = pneg %p170
      %p620 = pneg %p167
      %p621 = pneg %p191
      %p622 = pneg %p188
      %p623 = pneg %p212
      %p624 = pneg %p209
      %p625 = pneg %p233
      %p626 = pneg %p230
      %p627 = pneg %p254
      %p628 = pneg %p251
      %p629 = pneg %p275
      %p630 = pneg %p272
      %p631 = pneg %p296
      %p632 = pneg %p293
      %p633 = pneg %p317
      %p634 = pneg %p314
      %p635 = pneg %p338
      %p636 = pneg %p335
      %p637 = pneg %p359
      %p638 = pneg %p356
      %p639 = pneg %p380
      %p640 = pneg %p377
      %p641 = pneg %p401
      %p642 = pneg %p398
      %p643 = pneg %p422
      %p644 = pneg %p419
      %p645 = pneg %p443
      %p646 = pneg %p440
      %p647 = pneg %p471
      %p648 = pneg %p468
      %s649 = smul.u32 2, %s34
      %p650 = scmp.lt.s32.totalorder %s33, 1
      %s651 = scalar_select %p650, %s33, 1
      %p652 = scmp.lt.s32.totalorder %s649, 1
      %s653 = scalar_select %p652, %s649, 1
      %s654 = smul.addr %s651, 2
      %s655 = sadd.s32 %s653, %s654
      %s656 = smul.addr %s655, 8
      %s657 = scalar_lea.vmem %s18, %s656
      %s658 = smul.u32 2, %s34
      %p659 = scmp.lt.s32.totalorder %s33, 1
      %s660 = scalar_select %p659, %s33, 1
      %p661 = scmp.lt.s32.totalorder %s658, 1
      %s662 = scalar_select %p661, %s658, 1
      %s663 = smul.addr %s660, 2
      %s664 = sadd.s32 %s662, %s663
      %s665 = smul.addr %s664, 4
      %s666 = scalar_lea.vmem %s0, %s665
      %s667 = smul.u32 2, %s34
      %s668 = smul.u32 2, %s34
      %p669 = scmp.lt.s32.totalorder %s33, 1
      %s670 = scalar_select %p669, %s33, 1
      %p671 = scmp.lt.s32.totalorder %s668, 1
      %s672 = scalar_select %p671, %s668, 1
      %s673 = smul.addr %s670, 2
      %s674 = sadd.s32 %s672, %s673
      %s675 = smul.addr %s674, 8
      %s676 = scalar_lea.vmem %s1, %s675
      %s677 = smul.u32 2, %s34
      %p678 = scmp.lt.s32.totalorder %s33, 1
      %s679 = scalar_select %p678, %s33, 1
      %s680 = smul.addr %s679, 50
      %s681 = smul.addr %s680, 4
      %s682 = scalar_lea.vmem %s2, %s681
      %p683 = scmp.lt.s32.totalorder %s33, 1
      %s684 = scalar_select %p683, %s33, 1
      %s685 = scalar_lea.vmem %s3, %s684
      %p686 = scmp.lt.s32.totalorder %s33, 1
      %s687 = scalar_select %p686, %s33, 1
      %s688 = scalar_lea.vmem %s4, %s687
      %s689 = smul.u32 2, %s34
      %p690 = scmp.lt.s32.totalorder %s33, 1
      %s691 = scalar_select %p690, %s33, 1
      %p692 = scmp.lt.s32.totalorder %s689, 1
      %s693 = scalar_select %p692, %s689, 1
      %s694 = smul.addr %s691, 2
      %s695 = sadd.s32 %s693, %s694
      %s696 = smul.addr %s695, 8
      %s697 = scalar_lea.vmem %s18, %s696
      %s698 = smul.u32 2, %s34
      %v700 = vld [vmem:[%s666] sm:$0xf]
      %v701 = vld [vmem:[%s666 + $0x4] sm:$0xf]
      %v702 = vld [vmem:[%s5] sm:$0xff]
      %v703 = vld [vmem:[%s5 + $0x8] sm:$0xf]
      %v704 = vld [vmem:[%s5 + $0xc] sm:$0xff]
      %v705 = vld [vmem:[%s5 + $0x14] sm:$0xf]
      %v706 = vld [vmem:[%s5 + $0x18] sm:$0x11]
      %v707 = vld [vmem:[%s5 + $0x20] sm:$0x1]
      %v710 = vunpack.c.l.b16 %v700
      %v711 = vunpack.c.l.b16 %v701
      %v712 = vpack.c.b16 %v711, %v710
      %v719 = vunpack.c.l.b16 %v702
      %v720 = vunpack.c.h.b16 %v702
      %v721 = vunpack.c.l.b16 %v703
      %v722 = vunpack.c.l.b16 %v704
      %v723 = vunpack.c.h.b16 %v704
      %v724 = vunpack.c.l.b16 %v705
      %v725 = vunpack.c.l.b16 %v706
      %v726 = vunpack.c.h.b16 %v706
      %v727 = vunpack.c.l.b16 %v707
      %v728 = vpack.c.b16 %v722, %v719
      %v729 = vpack.c.b16 %v723, %v720
      %v730 = vpack.c.b16 %v724, %v721
      %v731 = vpack.c.b16 %v725, %v725
      %v732 = vpack.c.b16 %v726, %v726
      %v733 = vpack.c.b16 %v727, %v727
      %vm737 = vcmask 138240
      %v739 = vsel %vm737, %v712, 0
      %vm741 = vcmask 1040384
      %v742 = vsel 0, 4294967295, 65535
      %v743 = vsel %vm741, %v742, 0
      %v745 = vand.u32 %v731, %v743
      %v748 = vand.u32 %v732, %v743
      %v751 = vand.u32 %v733, %v743
      %753 = vmatprep.subr.bf16.mxu0 0
      %754 = vmatpush1.bf16.msra.mxu0 0
      %755 = vmatprep.subr.bf16.mxu0 0
      %756 = vmatpush1.bf16.msra.mxu0 0
      %757 = vmatprep.subr.bf16.mxu0 0
      %758 = vmatpush1.bf16.msra.mxu0 0
      %759 = vmatprep.subr.bf16.mxu0 0
      %760 = vmatpush1.bf16.msra.mxu0 0
      %761 = vmatprep.subr.bf16.mxu0 0
      %762 = vmatpush1.bf16.msra.mxu0 0
      %763 = vmatprep.subr.bf16.mxu0 0
      %764 = vmatpush1.bf16.msra.mxu0 0
      %765 = vmatprep.subr.bf16.mxu0 %v748
      %766 = vmatpush1.bf16.msra.mxu0 %v745
      %767 = vmatprep.subr.bf16.mxu0 %v729
      %768 = vmatpush1.bf16.msra.mxu0 %v728
      %769 = vmatprep.subr.bf16.mxu0 0
      %770 = vmatpush2.bf16.msra.mxu0 0
      %771 = vmatprep.subr.bf16.mxu0 0
      %772 = vmatpush2.bf16.msra.mxu0 0
      %773 = vmatprep.subr.bf16.mxu0 0
      %774 = vmatpush2.bf16.msra.mxu0 0
      %775 = vmatprep.subr.bf16.mxu0 0
      %776 = vmatpush2.bf16.msra.mxu0 0
      %777 = vmatprep.subr.bf16.mxu0 0
      %778 = vmatpush2.bf16.msra.mxu0 0
      %779 = vmatprep.subr.bf16.mxu0 0
      %780 = vmatpush2.bf16.msra.mxu0 0
      %781 = vmatprep.subr.bf16.mxu0 0
      %782 = vmatpush2.bf16.msra.mxu0 0
      %783 = vmatprep.subr.bf16.mxu0 0
      %784 = vmatpush2.bf16.msra.mxu0 0
      %785 = vmatprep.mubr.bf16.mxu0 0
      %786 = vmatmul.mubr.bf16.gmra.mxu0 %v739
      %v787 = vpop.f32.mrf.mxu0
      %v788 = vadd.f32 0.0, %v787
      %v789 = vpop.f32.mrf.mxu0
      %v790 = vadd.f32 0.0, %v789
      %v791 = vpop.f32.mrf.mxu0
      %v792 = vadd.f32 0.0, %v791
      %v793 = vpop.f32.mrf.mxu0
      %v794 = vadd.f32 0.0, %v793
      %795 = vdwg.mxu0
      %796 = vmatprep.subr.bf16.mxu0 0
      %797 = vmatpush1.bf16.msra.mxu0 0
      %798 = vmatprep.subr.bf16.mxu0 0
      %799 = vmatpush1.bf16.msra.mxu0 0
      %800 = vmatprep.subr.bf16.mxu0 0
      %801 = vmatpush1.bf16.msra.mxu0 0
      %802 = vmatprep.subr.bf16.mxu0 0
      %803 = vmatpush1.bf16.msra.mxu0 0
      %804 = vmatprep.subr.bf16.mxu0 0
      %805 = vmatpush1.bf16.msra.mxu0 0
      %806 = vmatprep.subr.bf16.mxu0 0
      %807 = vmatpush1.bf16.msra.mxu0 0
      %808 = vmatprep.subr.bf16.mxu0 0
      %809 = vmatpush1.bf16.msra.mxu0 %v751
      %810 = vmatprep.subr.bf16.mxu0 0
      %811 = vmatpush1.bf16.msra.mxu0 %v730
      %812 = vmatprep.subr.bf16.mxu0 0
      %813 = vmatpush2.bf16.msra.mxu0 0
      %814 = vmatprep.subr.bf16.mxu0 0
      %815 = vmatpush2.bf16.msra.mxu0 0
      %816 = vmatprep.subr.bf16.mxu0 0
      %817 = vmatpush2.bf16.msra.mxu0 0
      %818 = vmatprep.subr.bf16.mxu0 0
      %819 = vmatpush2.bf16.msra.mxu0 0
      %820 = vmatprep.subr.bf16.mxu0 0
      %821 = vmatpush2.bf16.msra.mxu0 0
      %822 = vmatprep.subr.bf16.mxu0 0
      %823 = vmatpush2.bf16.msra.mxu0 0
      %824 = vmatprep.subr.bf16.mxu0 0
      %825 = vmatpush2.bf16.msra.mxu0 0
      %826 = vmatprep.subr.bf16.mxu0 0
      %827 = vmatpush2.bf16.msra.mxu0 0
      %828 = vmatprep.mubr.bf16.mxu0 0
      %829 = vmatmul.mubr.bf16.gmra.mxu0 %v739
      %v830 = vpop.f32.mrf.mxu0
      %v831 = vadd.f32 0.0, %v830
      %v832 = vpop.f32.mrf.mxu0
      %v833 = vpop.f32.mrf.mxu0
      %v834 = vadd.f32 0.0, %v833
      %v835 = vpop.f32.mrf.mxu0
      %836 = vdwg.mxu0
      %v837 = vld [vmem:[%s6] sm:$0x1]
      %v839 = vlaneseq
      %v840 = vshrl.u32 %v839, 7
      %v841 = vsub.s32 0, %v840
      %v842 = vrot.slane %v837, %v841
      %v844 = vadd.f32 %v788, %v842
      %v845 = vadd.f32 %v792, %v842
      %v846 = vmax.f32 %v844, 0.0
      %v847 = vmax.f32 %v845, 0.0
      %v848 = vld [vmem:[%s7] sm:$0x1]
      %v850 = vlaneseq
      %v851 = vshrl.u32 %v850, 7
      %v852 = vsub.s32 0, %v851
      %v853 = vrot.slane %v848, %v852
      %v855 = vadd.f32 %v790, %v853
      %v856 = vadd.f32 %v794, %v853
      %v857 = vld [vmem:[%s685] sm:$0x1]
      %v859 = vlaneseq
      %v860 = vshrl.u32 %v859, 7
      %v861 = vsub.s32 0, %v860
      %v862 = vrot.slane %v857, %v861
      %v864 = vadd.f32 %v855, %v862
      %v865 = vadd.f32 %v856, %v862
      %v866 = vmax.f32 %v864, 0.0
      %v867 = vmax.f32 %v865, 0.0
      %v868 = vld [vmem:[%s8] sm:$0x1]
      %v870 = vlaneseq
      %v871 = vshrl.u32 %v870, 7
      %v872 = vsub.s32 0, %v871
      %v873 = vrot.slane %v868, %v872
      %v875 = vadd.f32 %v831, %v873
      %v876 = vadd.f32 %v834, %v873
      %v877 = vld [vmem:[%s688] sm:$0x1]
      %v879 = vlaneseq
      %v880 = vshrl.u32 %v879, 7
      %v881 = vsub.s32 0, %v880
      %v882 = vrot.slane %v877, %v881
      %v884 = vadd.f32 %v875, %v882
      %v885 = vadd.f32 %v876, %v882
      %v886 = vpack.c.bf16 %v847, %v846
      %v887 = vld [vmem:[%s9] sm:$0xff]
      %v888 = vld [vmem:[%s9 + $0x8] sm:$0xff]
      %v889 = vld [vmem:[%s9 + $0x10] sm:$0xff]
      %v890 = vld [vmem:[%s9 + $0x18] sm:$0xff]
      %v891 = vld [vmem:[%s9 + $0x20] sm:$0xff]
      %v892 = vld [vmem:[%s9 + $0x28] sm:$0xff]
      %v893 = vld [vmem:[%s9 + $0x30] sm:$0xff]
      %v894 = vld [vmem:[%s9 + $0x38] sm:$0xff]
      %v895 = vld [vmem:[%s9 + $0x40] sm:$0xff]
      %v896 = vld [vmem:[%s9 + $0x48] sm:$0xff]
      %v897 = vld [vmem:[%s9 + $0x50] sm:$0xff]
      %v898 = vld [vmem:[%s9 + $0x58] sm:$0xff]
      %v899 = vld [vmem:[%s9 + $0x60] sm:$0xff]
      %v900 = vld [vmem:[%s9 + $0x68] sm:$0xff]
      %v901 = vld [vmem:[%s9 + $0x70] sm:$0xff]
      %v902 = vld [vmem:[%s9 + $0x78] sm:$0xff]
      %v903 = vld [vmem:[%s10] sm:$0x3]
      %v905 = vlaneseq
      %v906 = vshrl.u32 %v905, 7
      %v907 = vsub.s32 0, %v906
      %v908 = vrot.slane %v903, %v907
      %v909 = vlaneseq
      %v910 = vshrl.u32 %v909, 7
      %v911 = vsub.s32 1, %v910
      %v912 = vrot.slane %v903, %v911
      %v931 = vunpack.c.l.b16 %v887
      %v932 = vunpack.c.h.b16 %v887
      %v933 = vunpack.c.l.b16 %v888
      %v934 = vunpack.c.h.b16 %v888
      %v935 = vunpack.c.l.b16 %v889
      %v936 = vunpack.c.h.b16 %v889
      %v937 = vunpack.c.l.b16 %v890
      %v938 = vunpack.c.h.b16 %v890
      %v939 = vunpack.c.l.b16 %v891
      %v940 = vunpack.c.h.b16 %v891
      %v941 = vunpack.c.l.b16 %v892
      %v942 = vunpack.c.h.b16 %v892
      %v943 = vunpack.c.l.b16 %v893
      %v944 = vunpack.c.h.b16 %v893
      %v945 = vunpack.c.l.b16 %v894
      %v946 = vunpack.c.h.b16 %v894
      %v947 = vunpack.c.l.b16 %v895
      %v948 = vunpack.c.h.b16 %v895
      %v949 = vunpack.c.l.b16 %v896
      %v950 = vunpack.c.h.b16 %v896
      %v951 = vunpack.c.l.b16 %v897
      %v952 = vunpack.c.h.b16 %v897
      %v953 = vunpack.c.l.b16 %v898
      %v954 = vunpack.c.h.b16 %v898
      %v955 = vunpack.c.l.b16 %v899
      %v956 = vunpack.c.h.b16 %v899
      %v957 = vunpack.c.l.b16 %v900
      %v958 = vunpack.c.h.b16 %v900
      %v959 = vunpack.c.l.b16 %v901
      %v960 = vunpack.c.h.b16 %v901
      %v961 = vunpack.c.l.b16 %v902
      %v962 = vunpack.c.h.b16 %v902
      %v963 = vpack.c.b16 %v933, %v931
      %v964 = vpack.c.b16 %v934, %v932
      %v965 = vpack.c.b16 %v937, %v935
      %v966 = vpack.c.b16 %v938, %v936
      %v967 = vpack.c.b16 %v941, %v939
      %v968 = vpack.c.b16 %v942, %v940
      %v969 = vpack.c.b16 %v945, %v943
      %v970 = vpack.c.b16 %v946, %v944
      %v971 = vpack.c.b16 %v949, %v947
      %v972 = vpack.c.b16 %v950, %v948
      %v973 = vpack.c.b16 %v953, %v951
      %v974 = vpack.c.b16 %v954, %v952
      %v975 = vpack.c.b16 %v957, %v955
      %v976 = vpack.c.b16 %v958, %v956
      %v977 = vpack.c.b16 %v961, %v959
      %v978 = vpack.c.b16 %v962, %v960
      %995 = vmatprep.subr.bf16.mxu0 %v978
      %996 = vmatpush1.bf16.msra.mxu0 %v977
      %997 = vmatprep.subr.bf16.mxu0 %v976
      %998 = vmatpush1.bf16.msra.mxu0 %v975
      %999 = vmatprep.subr.bf16.mxu0 %v974
      %1000 = vmatpush1.bf16.msra.mxu0 %v973
      %1001 = vmatprep.subr.bf16.mxu0 %v972
      %1002 = vmatpush1.bf16.msra.mxu0 %v971
      %1003 = vmatprep.subr.bf16.mxu0 %v970
      %1004 = vmatpush1.bf16.msra.mxu0 %v969
      %1005 = vmatprep.subr.bf16.mxu0 %v968
      %1006 = vmatpush1.bf16.msra.mxu0 %v967
      %1007 = vmatprep.subr.bf16.mxu0 %v966
      %1008 = vmatpush1.bf16.msra.mxu0 %v965
      %1009 = vmatprep.subr.bf16.mxu0 %v964
      %1010 = vmatpush1.bf16.msra.mxu0 %v963
      %1011 = vmatprep.subr.bf16.mxu0 0
      %1012 = vmatpush2.bf16.msra.mxu0 0
      %1013 = vmatprep.subr.bf16.mxu0 0
      %1014 = vmatpush2.bf16.msra.mxu0 0
      %1015 = vmatprep.subr.bf16.mxu0 0
      %1016 = vmatpush2.bf16.msra.mxu0 0
      %1017 = vmatprep.subr.bf16.mxu0 0
      %1018 = vmatpush2.bf16.msra.mxu0 0
      %1019 = vmatprep.subr.bf16.mxu0 0
      %1020 = vmatpush2.bf16.msra.mxu0 0
      %1021 = vmatprep.subr.bf16.mxu0 0
      %1022 = vmatpush2.bf16.msra.mxu0 0
      %1023 = vmatprep.subr.bf16.mxu0 0
      %1024 = vmatpush2.bf16.msra.mxu0 0
      %1025 = vmatprep.subr.bf16.mxu0 0
      %1026 = vmatpush2.bf16.msra.mxu0 0
      %1027 = vmatprep.mubr.bf16.mxu0 0
      %1028 = vmatmul.mubr.bf16.gmra.mxu0 %v886
      %v1029 = vpop.f32.mrf.mxu0
      %v1030 = vadd.f32 %v908, %v1029
      %v1031 = vpop.f32.mrf.mxu0
      %v1032 = vadd.f32 %v912, %v1031
      %v1033 = vpop.f32.mrf.mxu0
      %v1034 = vadd.f32 %v908, %v1033
      %v1035 = vpop.f32.mrf.mxu0
      %v1036 = vadd.f32 %v912, %v1035
      %1037 = vdwg.mxu0
      %vm1038 = vcmask 556032
      %v1039 = vsel %vm1038, %v1032, -inf
      %v1040 = vmax.f32 %v1030, %v1039
      %1041 = vmax.xlane.f32.xlu0 %v1040
      %v1042 = vpop.xlane.xlu0 %1041
      %v1043 = vsel %vm1038, %v1036, -inf
      %v1044 = vmax.f32 %v1034, %v1043
      %1045 = vmax.xlane.f32.xlu0 %v1044
      %v1046 = vpop.xlane.xlu0 %1045
      %v1047 = vsub.f32 %v1030, %v1042
      %v1048 = vsub.f32 %v1032, %v1042
      %v1049 = vsub.f32 %v1034, %v1046
      %v1050 = vsub.f32 %v1036, %v1046
      %v1051 = vmul.f32 %v1047, 1.442695
      %v1052 = vpow.pop %v1051
      %v1053 = vmul.f32 %v1048, 1.442695
      %v1054 = vpow.pop %v1053
      %v1055 = vmul.f32 %v1049, 1.442695
      %v1056 = vpow.pop %v1055
      %v1057 = vmul.f32 %v1050, 1.442695
      %v1058 = vpow.pop %v1057
      %v1059 = vsel %vm1038, %v1054, 0.0
      %v1060 = vadd.f32 %v1052, %v1059
      %1061 = vadd.xlane.f32.xlu0 %v1060
      %v1062 = vpop.xlane.xlu0 %1061
      %v1063 = vsel %vm1038, %v1058, 0.0
      %v1064 = vadd.f32 %v1056, %v1063
      %1065 = vadd.xlane.f32.xlu0 %v1064
      %v1066 = vpop.xlane.xlu0 %1065
      %v1067 = vrcp.pop %v1062
      %v1068 = vrcp.pop %v1066
      %v1069 = vmul.f32 %v1052, %v1067
      %v1070 = vmul.f32 %v1054, %v1067
      %v1071 = vmul.f32 %v1056, %v1068
      %v1072 = vmul.f32 %v1058, %v1068
      %v1073 = vpack.c.bf16 %v867, %v866
      %v1074 = vld [vmem:[%s11] sm:$0xff]
      %v1075 = vld [vmem:[%s11 + $0x8] sm:$0xff]
      %v1076 = vld [vmem:[%s11 + $0x10] sm:$0xff]
      %v1077 = vld [vmem:[%s11 + $0x18] sm:$0xff]
      %v1078 = vld [vmem:[%s11 + $0x20] sm:$0xff]
      %v1079 = vld [vmem:[%s11 + $0x28] sm:$0xff]
      %v1080 = vld [vmem:[%s11 + $0x30] sm:$0xff]
      %v1081 = vld [vmem:[%s11 + $0x38] sm:$0xff]
      %v1082 = vld [vmem:[%s11 + $0x40] sm:$0xff]
      %v1083 = vld [vmem:[%s11 + $0x48] sm:$0xff]
      %v1084 = vld [vmem:[%s11 + $0x50] sm:$0xff]
      %v1085 = vld [vmem:[%s11 + $0x58] sm:$0xff]
      %v1086 = vld [vmem:[%s11 + $0x60] sm:$0xff]
      %v1087 = vld [vmem:[%s11 + $0x68] sm:$0xff]
      %v1088 = vld [vmem:[%s11 + $0x70] sm:$0xff]
      %v1089 = vld [vmem:[%s11 + $0x78] sm:$0xff]
      %v1090 = vld [vmem:[%s12] sm:$0x3]
      %v1092 = vlaneseq
      %v1093 = vshrl.u32 %v1092, 7
      %v1094 = vsub.s32 0, %v1093
      %v1095 = vrot.slane %v1090, %v1094
      %v1096 = vlaneseq
      %v1097 = vshrl.u32 %v1096, 7
      %v1098 = vsub.s32 1, %v1097
      %v1099 = vrot.slane %v1090, %v1098
      %v1118 = vunpack.c.l.b16 %v1074
      %v1119 = vunpack.c.h.b16 %v1074
      %v1120 = vunpack.c.l.b16 %v1075
      %v1121 = vunpack.c.h.b16 %v1075
      %v1122 = vunpack.c.l.b16 %v1076
      %v1123 = vunpack.c.h.b16 %v1076
      %v1124 = vunpack.c.l.b16 %v1077
      %v1125 = vunpack.c.h.b16 %v1077
      %v1126 = vunpack.c.l.b16 %v1078
      %v1127 = vunpack.c.h.b16 %v1078
      %v1128 = vunpack.c.l.b16 %v1079
      %v1129 = vunpack.c.h.b16 %v1079
      %v1130 = vunpack.c.l.b16 %v1080
      %v1131 = vunpack.c.h.b16 %v1080
      %v1132 = vunpack.c.l.b16 %v1081
      %v1133 = vunpack.c.h.b16 %v1081
      %v1134 = vunpack.c.l.b16 %v1082
      %v1135 = vunpack.c.h.b16 %v1082
      %v1136 = vunpack.c.l.b16 %v1083
      %v1137 = vunpack.c.h.b16 %v1083
      %v1138 = vunpack.c.l.b16 %v1084
      %v1139 = vunpack.c.h.b16 %v1084
      %v1140 = vunpack.c.l.b16 %v1085
      %v1141 = vunpack.c.h.b16 %v1085
      %v1142 = vunpack.c.l.b16 %v1086
      %v1143 = vunpack.c.h.b16 %v1086
      %v1144 = vunpack.c.l.b16 %v1087
      %v1145 = vunpack.c.h.b16 %v1087
      %v1146 = vunpack.c.l.b16 %v1088
      %v1147 = vunpack.c.h.b16 %v1088
      %v1148 = vunpack.c.l.b16 %v1089
      %v1149 = vunpack.c.h.b16 %v1089
      %v1150 = vpack.c.b16 %v1120, %v1118
      %v1151 = vpack.c.b16 %v1121, %v1119
      %v1152 = vpack.c.b16 %v1124, %v1122
      %v1153 = vpack.c.b16 %v1125, %v1123
      %v1154 = vpack.c.b16 %v1128, %v1126
      %v1155 = vpack.c.b16 %v1129, %v1127
      %v1156 = vpack.c.b16 %v1132, %v1130
      %v1157 = vpack.c.b16 %v1133, %v1131
      %v1158 = vpack.c.b16 %v1136, %v1134
      %v1159 = vpack.c.b16 %v1137, %v1135
      %v1160 = vpack.c.b16 %v1140, %v1138
      %v1161 = vpack.c.b16 %v1141, %v1139
      %v1162 = vpack.c.b16 %v1144, %v1142
      %v1163 = vpack.c.b16 %v1145, %v1143
      %v1164 = vpack.c.b16 %v1148, %v1146
      %v1165 = vpack.c.b16 %v1149, %v1147
      %1182 = vmatprep.subr.bf16.mxu0 %v1165
      %1183 = vmatpush1.bf16.msra.mxu0 %v1164
      %1184 = vmatprep.subr.bf16.mxu0 %v1163
      %1185 = vmatpush1.bf16.msra.mxu0 %v1162
      %1186 = vmatprep.subr.bf16.mxu0 %v1161
      %1187 = vmatpush1.bf16.msra.mxu0 %v1160
      %1188 = vmatprep.subr.bf16.mxu0 %v1159
      %1189 = vmatpush1.bf16.msra.mxu0 %v1158
      %1190 = vmatprep.subr.bf16.mxu0 %v1157
      %1191 = vmatpush1.bf16.msra.mxu0 %v1156
      %1192 = vmatprep.subr.bf16.mxu0 %v1155
      %1193 = vmatpush1.bf16.msra.mxu0 %v1154
      %1194 = vmatprep.subr.bf16.mxu0 %v1153
      %1195 = vmatpush1.bf16.msra.mxu0 %v1152
      %1196 = vmatprep.subr.bf16.mxu0 %v1151
      %1197 = vmatpush1.bf16.msra.mxu0 %v1150
      %1198 = vmatprep.subr.bf16.mxu0 0
      %1199 = vmatpush2.bf16.msra.mxu0 0
      %1200 = vmatprep.subr.bf16.mxu0 0
      %1201 = vmatpush2.bf16.msra.mxu0 0
      %1202 = vmatprep.subr.bf16.mxu0 0
      %1203 = vmatpush2.bf16.msra.mxu0 0
      %1204 = vmatprep.subr.bf16.mxu0 0
      %1205 = vmatpush2.bf16.msra.mxu0 0
      %1206 = vmatprep.subr.bf16.mxu0 0
      %1207 = vmatpush2.bf16.msra.mxu0 0
      %1208 = vmatprep.subr.bf16.mxu0 0
      %1209 = vmatpush2.bf16.msra.mxu0 0
      %1210 = vmatprep.subr.bf16.mxu0 0
      %1211 = vmatpush2.bf16.msra.mxu0 0
      %1212 = vmatprep.subr.bf16.mxu0 0
      %1213 = vmatpush2.bf16.msra.mxu0 0
      %1214 = vmatprep.mubr.bf16.mxu0 0
      %1215 = vmatmul.mubr.bf16.gmra.mxu0 %v1073
      %v1216 = vpop.f32.mrf.mxu0
      %v1217 = vadd.f32 %v1095, %v1216
      %v1218 = vpop.f32.mrf.mxu0
      %v1219 = vadd.f32 %v1099, %v1218
      %v1220 = vpop.f32.mrf.mxu0
      %v1221 = vadd.f32 %v1095, %v1220
      %v1222 = vpop.f32.mrf.mxu0
      %v1223 = vadd.f32 %v1099, %v1222
      %1224 = vdwg.mxu0
      %v1225 = vxor.u32 %v1217, 2147483648
      %v1226 = vxor.u32 %v1219, 2147483648
      %v1227 = vxor.u32 %v1221, 2147483648
      %v1228 = vxor.u32 %v1223, 2147483648
      %v1229 = vmul.f32 %v1225, 1.442695
      %v1230 = vpow.pop %v1229
      %v1231 = vmul.f32 %v1226, 1.442695
      %v1232 = vpow.pop %v1231
      %v1233 = vmul.f32 %v1227, 1.442695
      %v1234 = vpow.pop %v1233
      %v1235 = vmul.f32 %v1228, 1.442695
      %v1236 = vpow.pop %v1235
      %v1237 = vadd.f32 %v1230, 1.0
      %v1238 = vadd.f32 %v1232, 1.0
      %v1239 = vadd.f32 %v1234, 1.0
      %v1240 = vadd.f32 %v1236, 1.0
      %v1241 = vrcp.pop %v1237
      %v1242 = vmul.f32 1.0, %v1241
      %v1243 = vrcp.pop %v1238
      %v1244 = vmul.f32 1.0, %v1243
      %v1245 = vrcp.pop %v1239
      %v1246 = vmul.f32 1.0, %v1245
      %v1247 = vrcp.pop %v1240
      %v1248 = vmul.f32 1.0, %v1247
      %v1249 = vpack.c.bf16 %v1071, %v1069
      %v1250 = vpack.c.bf16 %v1072, %v1070
      %v1251 = vld [vmem:[%s682] sm:$0xff]
      %v1252 = vld [vmem:[%s682 + $0x8] sm:$0xff]
      %v1253 = vld [vmem:[%s682 + $0x10] sm:$0xff]
      %v1254 = vld [vmem:[%s682 + $0x18] sm:$0xff]
      %v1255 = vld [vmem:[%s682 + $0x20] sm:$0xff]
      %v1256 = vld [vmem:[%s682 + $0x28] sm:$0xff]
      %v1257 = vld [vmem:[%s682 + $0x30] sm:$0xff]
      %v1258 = vld [vmem:[%s682 + $0x38] sm:$0xff]
      %v1259 = vld [vmem:[%s682 + $0x40] sm:$0xff]
      %v1260 = vld [vmem:[%s682 + $0x48] sm:$0xff]
      %v1261 = vld [vmem:[%s682 + $0x50] sm:$0xff]
      %v1262 = vld [vmem:[%s682 + $0x58] sm:$0xff]
      %v1263 = vld [vmem:[%s682 + $0x60] sm:$0xff]
      %v1264 = vld [vmem:[%s682 + $0x68] sm:$0xff]
      %v1265 = vld [vmem:[%s682 + $0x70] sm:$0xff]
      %v1266 = vld [vmem:[%s682 + $0x78] sm:$0xff]
      %v1267 = vld [vmem:[%s682 + $0x80] sm:$0xff]
      %v1268 = vld [vmem:[%s682 + $0x88] sm:$0xff]
      %v1269 = vld [vmem:[%s682 + $0x90] sm:$0xff]
      %v1270 = vld [vmem:[%s682 + $0x98] sm:$0xff]
      %v1271 = vld [vmem:[%s682 + $0xa0] sm:$0xff]
      %v1272 = vld [vmem:[%s682 + $0xa8] sm:$0xff]
      %v1273 = vld [vmem:[%s682 + $0xb0] sm:$0xff]
      %v1274 = vld [vmem:[%s682 + $0xb8] sm:$0xff]
      %v1275 = vld [vmem:[%s682 + $0xc0] sm:$0x33]
      %v1301 = vunpack.c.l.b16 %v1251
      %v1302 = vunpack.c.h.b16 %v1251
      %v1303 = vunpack.c.l.b16 %v1252
      %v1304 = vunpack.c.h.b16 %v1252
      %v1305 = vunpack.c.l.b16 %v1253
      %v1306 = vunpack.c.h.b16 %v1253
      %v1307 = vunpack.c.l.b16 %v1254
      %v1308 = vunpack.c.h.b16 %v1254
      %v1309 = vunpack.c.l.b16 %v1255
      %v1310 = vunpack.c.h.b16 %v1255
      %v1311 = vunpack.c.l.b16 %v1256
      %v1312 = vunpack.c.h.b16 %v1256
      %v1313 = vunpack.c.l.b16 %v1257
      %v1314 = vunpack.c.h.b16 %v1257
      %v1315 = vunpack.c.l.b16 %v1258
      %v1316 = vunpack.c.h.b16 %v1258
      %v1317 = vunpack.c.l.b16 %v1259
      %v1318 = vunpack.c.h.b16 %v1259
      %v1319 = vunpack.c.l.b16 %v1260
      %v1320 = vunpack.c.h.b16 %v1260
      %v1321 = vunpack.c.l.b16 %v1261
      %v1322 = vunpack.c.h.b16 %v1261
      %v1323 = vunpack.c.l.b16 %v1262
      %v1324 = vunpack.c.h.b16 %v1262
      %v1325 = vunpack.c.l.b16 %v1263
      %v1326 = vunpack.c.h.b16 %v1263
      %v1327 = vunpack.c.l.b16 %v1264
      %v1328 = vunpack.c.h.b16 %v1264
      %v1329 = vunpack.c.l.b16 %v1265
      %v1330 = vunpack.c.h.b16 %v1265
      %v1331 = vunpack.c.l.b16 %v1266
      %v1332 = vunpack.c.h.b16 %v1266
      %v1333 = vunpack.c.l.b16 %v1267
      %v1334 = vunpack.c.h.b16 %v1267
      %v1335 = vunpack.c.l.b16 %v1268
      %v1336 = vunpack.c.h.b16 %v1268
      %v1337 = vunpack.c.l.b16 %v1269
      %v1338 = vunpack.c.h.b16 %v1269
      %v1339 = vunpack.c.l.b16 %v1270
      %v1340 = vunpack.c.h.b16 %v1270
      %v1341 = vunpack.c.l.b16 %v1271
      %v1342 = vunpack.c.h.b16 %v1271
      %v1343 = vunpack.c.l.b16 %v1272
      %v1344 = vunpack.c.h.b16 %v1272
      %v1345 = vunpack.c.l.b16 %v1273
      %v1346 = vunpack.c.h.b16 %v1273
      %v1347 = vunpack.c.l.b16 %v1274
      %v1348 = vunpack.c.h.b16 %v1274
      %v1349 = vunpack.c.l.b16 %v1275
      %v1350 = vunpack.c.h.b16 %v1275
      %v1351 = vpack.c.b16 %v1303, %v1301
      %v1352 = vpack.c.b16 %v1304, %v1302
      %v1353 = vpack.c.b16 %v1307, %v1305
      %v1354 = vpack.c.b16 %v1308, %v1306
      %v1355 = vpack.c.b16 %v1311, %v1309
      %v1356 = vpack.c.b16 %v1312, %v1310
      %v1357 = vpack.c.b16 %v1315, %v1313
      %v1358 = vpack.c.b16 %v1316, %v1314
      %v1359 = vpack.c.b16 %v1319, %v1317
      %v1360 = vpack.c.b16 %v1320, %v1318
      %v1361 = vpack.c.b16 %v1323, %v1321
      %v1362 = vpack.c.b16 %v1324, %v1322
      %v1363 = vpack.c.b16 %v1327, %v1325
      %v1364 = vpack.c.b16 %v1328, %v1326
      %v1365 = vpack.c.b16 %v1331, %v1329
      %v1366 = vpack.c.b16 %v1332, %v1330
      %v1367 = vpack.c.b16 %v1335, %v1333
      %v1368 = vpack.c.b16 %v1336, %v1334
      %v1369 = vpack.c.b16 %v1339, %v1337
      %v1370 = vpack.c.b16 %v1340, %v1338
      %v1371 = vpack.c.b16 %v1343, %v1341
      %v1372 = vpack.c.b16 %v1344, %v1342
      %v1373 = vpack.c.b16 %v1347, %v1345
      %v1374 = vpack.c.b16 %v1348, %v1346
      %v1375 = vpack.c.b16 %v1349, %v1349
      %v1376 = vpack.c.b16 %v1350, %v1350
      %v1402 = vsel %vm1038, %v1250, 0
      %vm1404 = vcmask 1041408
      %v1406 = vsel %vm1404, %v1375, 0
      %v1409 = vsel %vm1404, %v1376, 0
      %1411 = vmatprep.subr.bf16.mxu0 %v1366
      %1412 = vmatpush1.bf16.msra.mxu0 %v1365
      %1413 = vmatprep.subr.bf16.mxu0 %v1364
      %1414 = vmatpush1.bf16.msra.mxu0 %v1363
      %1415 = vmatprep.subr.bf16.mxu0 %v1362
      %1416 = vmatpush1.bf16.msra.mxu0 %v1361
      %1417 = vmatprep.subr.bf16.mxu0 %v1360
      %1418 = vmatpush1.bf16.msra.mxu0 %v1359
      %1419 = vmatprep.subr.bf16.mxu0 %v1358
      %1420 = vmatpush1.bf16.msra.mxu0 %v1357
      %1421 = vmatprep.subr.bf16.mxu0 %v1356
      %1422 = vmatpush1.bf16.msra.mxu0 %v1355
      %1423 = vmatprep.subr.bf16.mxu0 %v1354
      %1424 = vmatpush1.bf16.msra.mxu0 %v1353
      %1425 = vmatprep.subr.bf16.mxu0 %v1352
      %1426 = vmatpush1.bf16.msra.mxu0 %v1351
      %1427 = vmatprep.subr.bf16.mxu0 0
      %1428 = vmatpush2.bf16.msra.mxu0 0
      %1429 = vmatprep.subr.bf16.mxu0 0
      %1430 = vmatpush2.bf16.msra.mxu0 0
      %1431 = vmatprep.subr.bf16.mxu0 0
      %1432 = vmatpush2.bf16.msra.mxu0 0
      %1433 = vmatprep.subr.bf16.mxu0 %v1409
      %1434 = vmatpush2.bf16.msra.mxu0 %v1406
      %1435 = vmatprep.subr.bf16.mxu0 %v1374
      %1436 = vmatpush2.bf16.msra.mxu0 %v1373
      %1437 = vmatprep.subr.bf16.mxu0 %v1372
      %1438 = vmatpush2.bf16.msra.mxu0 %v1371
      %1439 = vmatprep.subr.bf16.mxu0 %v1370
      %1440 = vmatpush2.bf16.msra.mxu0 %v1369
      %1441 = vmatprep.subr.bf16.mxu0 %v1368
      %1442 = vmatpush2.bf16.msra.mxu0 %v1367
      %1443 = vmatprep.mubr.bf16.mxu0 %v1402
      %1444 = vmatmul.mubr.bf16.gmra.mxu0 %v1249
      %v1445 = vpop.f32.mrf.mxu0
      %v1446 = vadd.f32 0.0, %v1445
      %v1447 = vpop.f32.mrf.mxu0
      %v1448 = vadd.f32 0.0, %v1447
      %v1449 = vpop.f32.mrf.mxu0
      %v1450 = vadd.f32 0.0, %v1449
      %v1451 = vpop.f32.mrf.mxu0
      %v1452 = vadd.f32 0.0, %v1451
      %1453 = vdwg.mxu0
      %v1454 = vmul.f32 %v1242, %v1446
      %v1455 = vmul.f32 %v1244, %v1448
      %v1456 = vmul.f32 %v1246, %v1450
      %v1457 = vmul.f32 %v1248, %v1452
      %v1458 = vpack.c.bf16 %v1456, %v1454
      %v1459 = vpack.c.bf16 %v1457, %v1455
      %v1460 = vld [vmem:[%s13] sm:$0xf]
      %v1461 = vld [vmem:[%s13 + $0x4] sm:$0xf]
      %v1462 = vld [vmem:[%s13 + $0x8] sm:$0xf]
      %v1463 = vld [vmem:[%s13 + $0xc] sm:$0xf]
      %v1464 = vld [vmem:[%s13 + $0x10] sm:$0xf]
      %v1465 = vld [vmem:[%s13 + $0x14] sm:$0xf]
      %v1466 = vld [vmem:[%s13 + $0x18] sm:$0xf]
      %v1467 = vld [vmem:[%s13 + $0x1c] sm:$0xf]
      %v1468 = vld [vmem:[%s13 + $0x20] sm:$0xf]
      %v1469 = vld [vmem:[%s13 + $0x24] sm:$0xf]
      %v1470 = vld [vmem:[%s13 + $0x28] sm:$0xf]
      %v1471 = vld [vmem:[%s13 + $0x2c] sm:$0xf]
      %v1472 = vld [vmem:[%s13 + $0x30] sm:$0xf]
      %v1473 = vld [vmem:[%s13 + $0x34] sm:$0xf]
      %v1474 = vld [vmem:[%s13 + $0x38] sm:$0xf]
      %v1475 = vld [vmem:[%s13 + $0x3c] sm:$0xf]
      %v1476 = vld [vmem:[%s13 + $0x40] sm:$0xf]
      %v1477 = vld [vmem:[%s13 + $0x44] sm:$0xf]
      %v1478 = vld [vmem:[%s13 + $0x48] sm:$0xf]
      %v1479 = vld [vmem:[%s13 + $0x4c] sm:$0xf]
      %v1480 = vld [vmem:[%s13 + $0x50] sm:$0xf]
      %v1481 = vld [vmem:[%s13 + $0x54] sm:$0xf]
      %v1482 = vld [vmem:[%s13 + $0x58] sm:$0xf]
      %v1483 = vld [vmem:[%s13 + $0x5c] sm:$0xf]
      %v1484 = vld [vmem:[%s13 + $0x60] sm:$0xf]
      %v1485 = vld [vmem:[%s13 + $0x64] sm:$0xf]
      %v1486 = vld [vmem:[%s13 + $0x68] sm:$0xf]
      %v1487 = vld [vmem:[%s13 + $0x6c] sm:$0xf]
      %v1488 = vld [vmem:[%s13 + $0x70] sm:$0xf]
      %v1489 = vld [vmem:[%s13 + $0x74] sm:$0xf]
      %v1490 = vld [vmem:[%s13 + $0x78] sm:$0xf]
      %v1491 = vld [vmem:[%s13 + $0x7c] sm:$0xf]
      %v1524 = vunpack.c.l.b16 %v1460
      %v1525 = vunpack.c.l.b16 %v1461
      %v1526 = vunpack.c.l.b16 %v1462
      %v1527 = vunpack.c.l.b16 %v1463
      %v1528 = vunpack.c.l.b16 %v1464
      %v1529 = vunpack.c.l.b16 %v1465
      %v1530 = vunpack.c.l.b16 %v1466
      %v1531 = vunpack.c.l.b16 %v1467
      %v1532 = vunpack.c.l.b16 %v1468
      %v1533 = vunpack.c.l.b16 %v1469
      %v1534 = vunpack.c.l.b16 %v1470
      %v1535 = vunpack.c.l.b16 %v1471
      %v1536 = vunpack.c.l.b16 %v1472
      %v1537 = vunpack.c.l.b16 %v1473
      %v1538 = vunpack.c.l.b16 %v1474
      %v1539 = vunpack.c.l.b16 %v1475
      %v1540 = vunpack.c.l.b16 %v1476
      %v1541 = vunpack.c.l.b16 %v1477
      %v1542 = vunpack.c.l.b16 %v1478
      %v1543 = vunpack.c.l.b16 %v1479
      %v1544 = vunpack.c.l.b16 %v1480
      %v1545 = vunpack.c.l.b16 %v1481
      %v1546 = vunpack.c.l.b16 %v1482
      %v1547 = vunpack.c.l.b16 %v1483
      %v1548 = vunpack.c.l.b16 %v1484
      %v1549 = vunpack.c.l.b16 %v1485
      %v1550 = vunpack.c.l.b16 %v1486
      %v1551 = vunpack.c.l.b16 %v1487
      %v1552 = vunpack.c.l.b16 %v1488
      %v1553 = vunpack.c.l.b16 %v1489
      %v1554 = vunpack.c.l.b16 %v1490
      %v1555 = vunpack.c.l.b16 %v1491
      %v1556 = vpack.c.b16 %v1525, %v1524
      %v1557 = vpack.c.b16 %v1527, %v1526
      %v1558 = vpack.c.b16 %v1529, %v1528
      %v1559 = vpack.c.b16 %v1531, %v1530
      %v1560 = vpack.c.b16 %v1533, %v1532
      %v1561 = vpack.c.b16 %v1535, %v1534
      %v1562 = vpack.c.b16 %v1537, %v1536
      %v1563 = vpack.c.b16 %v1539, %v1538
      %v1564 = vpack.c.b16 %v1541, %v1540
      %v1565 = vpack.c.b16 %v1543, %v1542
      %v1566 = vpack.c.b16 %v1545, %v1544
      %v1567 = vpack.c.b16 %v1547, %v1546
      %v1568 = vpack.c.b16 %v1549, %v1548
      %v1569 = vpack.c.b16 %v1551, %v1550
      %v1570 = vpack.c.b16 %v1553, %v1552
      %v1571 = vpack.c.b16 %v1555, %v1554
      %1588 = vmatprep.subr.bf16.mxu0 0
      %1589 = vmatpush1.bf16.msra.mxu0 %v1563
      %1590 = vmatprep.subr.bf16.mxu0 0
      %1591 = vmatpush1.bf16.msra.mxu0 %v1562
      %1592 = vmatprep.subr.bf16.mxu0 0
      %1593 = vmatpush1.bf16.msra.mxu0 %v1561
      %1594 = vmatprep.subr.bf16.mxu0 0
      %1595 = vmatpush1.bf16.msra.mxu0 %v1560
      %1596 = vmatprep.subr.bf16.mxu0 0
      %1597 = vmatpush1.bf16.msra.mxu0 %v1559
      %1598 = vmatprep.subr.bf16.mxu0 0
      %1599 = vmatpush1.bf16.msra.mxu0 %v1558
      %1600 = vmatprep.subr.bf16.mxu0 0
      %1601 = vmatpush1.bf16.msra.mxu0 %v1557
      %1602 = vmatprep.subr.bf16.mxu0 0
      %1603 = vmatpush1.bf16.msra.mxu0 %v1556
      %1604 = vmatprep.subr.bf16.mxu0 0
      %1605 = vmatpush2.bf16.msra.mxu0 %v1571
      %1606 = vmatprep.subr.bf16.mxu0 0
      %1607 = vmatpush2.bf16.msra.mxu0 %v1570
      %1608 = vmatprep.subr.bf16.mxu0 0
      %1609 = vmatpush2.bf16.msra.mxu0 %v1569
      %1610 = vmatprep.subr.bf16.mxu0 0
      %1611 = vmatpush2.bf16.msra.mxu0 %v1568
      %1612 = vmatprep.subr.bf16.mxu0 0
      %1613 = vmatpush2.bf16.msra.mxu0 %v1567
      %1614 = vmatprep.subr.bf16.mxu0 0
      %1615 = vmatpush2.bf16.msra.mxu0 %v1566
      %1616 = vmatprep.subr.bf16.mxu0 0
      %1617 = vmatpush2.bf16.msra.mxu0 %v1565
      %1618 = vmatprep.subr.bf16.mxu0 0
      %1619 = vmatpush2.bf16.msra.mxu0 %v1564
      %1620 = vmatprep.mubr.bf16.mxu0 %v1459
      %1621 = vmatmul.mubr.bf16.gmra.mxu0 %v1458
      %v1622 = vpop.f32.mrf.mxu0
      %v1623 = vadd.f32 0.0, %v1622
      %v1624 = vpop.f32.mrf.mxu0
      %v1625 = vpop.f32.mrf.mxu0
      %v1626 = vadd.f32 0.0, %v1625
      %v1627 = vpop.f32.mrf.mxu0
      %1628 = vdwg.mxu0
      %v1629 = vadd.f32 %v884, %v1623
      %v1630 = vadd.f32 %v885, %v1626
      %v1631 = vmax.f32 %v1629, 0.0
      %v1632 = vmax.f32 %v1630, 0.0
      %v1633 = vpack.c.bf16 %v1632, %v1631
      %v1634 = vld [vmem:[%s14] sm:$0xf]
      %v1635 = vld [vmem:[%s14 + $0x4] sm:$0xf]
      %v1636 = vld [vmem:[%s14 + $0x8] sm:$0xf]
      %v1637 = vld [vmem:[%s14 + $0xc] sm:$0xf]
      %v1638 = vld [vmem:[%s14 + $0x10] sm:$0xf]
      %v1639 = vld [vmem:[%s14 + $0x14] sm:$0xf]
      %v1640 = vld [vmem:[%s14 + $0x18] sm:$0xf]
      %v1641 = vld [vmem:[%s14 + $0x1c] sm:$0xf]
      %v1642 = vld [vmem:[%s14 + $0x20] sm:$0xf]
      %v1643 = vld [vmem:[%s14 + $0x24] sm:$0xf]
      %v1644 = vld [vmem:[%s14 + $0x28] sm:$0xf]
      %v1645 = vld [vmem:[%s14 + $0x2c] sm:$0xf]
      %v1646 = vld [vmem:[%s14 + $0x30] sm:$0xf]
      %v1647 = vld [vmem:[%s14 + $0x34] sm:$0xf]
      %v1648 = vld [vmem:[%s14 + $0x38] sm:$0xf]
      %v1649 = vld [vmem:[%s14 + $0x3c] sm:$0xf]
      %v1650 = vld [vmem:[%s15] sm:$0x1]
      %v1652 = vlaneseq
      %v1653 = vshrl.u32 %v1652, 7
      %v1654 = vsub.s32 0, %v1653
      %v1655 = vrot.slane %v1650, %v1654
      %v1673 = vunpack.c.l.b16 %v1634
      %v1674 = vunpack.c.l.b16 %v1635
      %v1675 = vunpack.c.l.b16 %v1636
      %v1676 = vunpack.c.l.b16 %v1637
      %v1677 = vunpack.c.l.b16 %v1638
      %v1678 = vunpack.c.l.b16 %v1639
      %v1679 = vunpack.c.l.b16 %v1640
      %v1680 = vunpack.c.l.b16 %v1641
      %v1681 = vunpack.c.l.b16 %v1642
      %v1682 = vunpack.c.l.b16 %v1643
      %v1683 = vunpack.c.l.b16 %v1644
      %v1684 = vunpack.c.l.b16 %v1645
      %v1685 = vunpack.c.l.b16 %v1646
      %v1686 = vunpack.c.l.b16 %v1647
      %v1687 = vunpack.c.l.b16 %v1648
      %v1688 = vunpack.c.l.b16 %v1649
      %v1689 = vpack.c.b16 %v1674, %v1673
      %v1690 = vpack.c.b16 %v1676, %v1675
      %v1691 = vpack.c.b16 %v1678, %v1677
      %v1692 = vpack.c.b16 %v1680, %v1679
      %v1693 = vpack.c.b16 %v1682, %v1681
      %v1694 = vpack.c.b16 %v1684, %v1683
      %v1695 = vpack.c.b16 %v1686, %v1685
      %v1696 = vpack.c.b16 %v1688, %v1687
      %1705 = vmatprep.subr.bf16.mxu0 0
      %1706 = vmatpush1.bf16.msra.mxu0 %v1696
      %1707 = vmatprep.subr.bf16.mxu0 0
      %1708 = vmatpush1.bf16.msra.mxu0 %v1695
      %1709 = vmatprep.subr.bf16.mxu0 0
      %1710 = vmatpush1.bf16.msra.mxu0 %v1694
      %1711 = vmatprep.subr.bf16.mxu0 0
      %1712 = vmatpush1.bf16.msra.mxu0 %v1693
      %1713 = vmatprep.subr.bf16.mxu0 0
      %1714 = vmatpush1.bf16.msra.mxu0 %v1692
      %1715 = vmatprep.subr.bf16.mxu0 0
      %1716 = vmatpush1.bf16.msra.mxu0 %v1691
      %1717 = vmatprep.subr.bf16.mxu0 0
      %1718 = vmatpush1.bf16.msra.mxu0 %v1690
      %1719 = vmatprep.subr.bf16.mxu0 0
      %1720 = vmatpush1.bf16.msra.mxu0 %v1689
      %1721 = vmatprep.subr.bf16.mxu0 0
      %1722 = vmatpush2.bf16.msra.mxu0 0
      %1723 = vmatprep.subr.bf16.mxu0 0
      %1724 = vmatpush2.bf16.msra.mxu0 0
      %1725 = vmatprep.subr.bf16.mxu0 0
      %1726 = vmatpush2.bf16.msra.mxu0 0
      %1727 = vmatprep.subr.bf16.mxu0 0
      %1728 = vmatpush2.bf16.msra.mxu0 0
      %1729 = vmatprep.subr.bf16.mxu0 0
      %1730 = vmatpush2.bf16.msra.mxu0 0
      %1731 = vmatprep.subr.bf16.mxu0 0
      %1732 = vmatpush2.bf16.msra.mxu0 0
      %1733 = vmatprep.subr.bf16.mxu0 0
      %1734 = vmatpush2.bf16.msra.mxu0 0
      %1735 = vmatprep.subr.bf16.mxu0 0
      %1736 = vmatpush2.bf16.msra.mxu0 0
      %1737 = vmatprep.mubr.bf16.mxu0 0
      %1738 = vmatmul.mubr.bf16.gmra.mxu0 %v1633
      %v1739 = vpop.f32.mrf.mxu0
      %v1740 = vadd.f32 %v1655, %v1739
      %v1741 = vpop.f32.mrf.mxu0
      %v1742 = vpop.f32.mrf.mxu0
      %v1743 = vadd.f32 %v1655, %v1742
      %v1744 = vpop.f32.mrf.mxu0
      %1745 = vdwg.mxu0
      %v1746 = vmax.f32 %v1740, 0.0
      %v1747 = vmax.f32 %v1743, 0.0
      %v1748 = vpack.c.bf16 %v1747, %v1746
      %v1749 = vld [vmem:[%s16] sm:$0xf]
      %v1750 = vld [vmem:[%s16 + $0x4] sm:$0xf]
      %v1751 = vld [vmem:[%s16 + $0x8] sm:$0xf]
      %v1752 = vld [vmem:[%s16 + $0xc] sm:$0xf]
      %v1753 = vld [vmem:[%s16 + $0x10] sm:$0xf]
      %v1754 = vld [vmem:[%s16 + $0x14] sm:$0xf]
      %v1755 = vld [vmem:[%s16 + $0x18] sm:$0xf]
      %v1756 = vld [vmem:[%s16 + $0x1c] sm:$0xf]
      %v1757 = vld [vmem:[%s16 + $0x20] sm:$0xf]
      %v1758 = vld [vmem:[%s16 + $0x24] sm:$0xf]
      %v1759 = vld [vmem:[%s16 + $0x28] sm:$0xf]
      %v1760 = vld [vmem:[%s16 + $0x2c] sm:$0xf]
      %v1761 = vld [vmem:[%s16 + $0x30] sm:$0xf]
      %v1762 = vld [vmem:[%s16 + $0x34] sm:$0xf]
      %v1763 = vld [vmem:[%s16 + $0x38] sm:$0xf]
      %v1764 = vld [vmem:[%s16 + $0x3c] sm:$0xf]
      %v1765 = vld [vmem:[%s17] sm:$0x1]
      %v1767 = vlaneseq
      %v1768 = vshrl.u32 %v1767, 7
      %v1769 = vsub.s32 0, %v1768
      %v1770 = vrot.slane %v1765, %v1769
      %v1788 = vunpack.c.l.b16 %v1749
      %v1789 = vunpack.c.l.b16 %v1750
      %v1790 = vunpack.c.l.b16 %v1751
      %v1791 = vunpack.c.l.b16 %v1752
      %v1792 = vunpack.c.l.b16 %v1753
      %v1793 = vunpack.c.l.b16 %v1754
      %v1794 = vunpack.c.l.b16 %v1755
      %v1795 = vunpack.c.l.b16 %v1756
      %v1796 = vunpack.c.l.b16 %v1757
      %v1797 = vunpack.c.l.b16 %v1758
      %v1798 = vunpack.c.l.b16 %v1759
      %v1799 = vunpack.c.l.b16 %v1760
      %v1800 = vunpack.c.l.b16 %v1761
      %v1801 = vunpack.c.l.b16 %v1762
      %v1802 = vunpack.c.l.b16 %v1763
      %v1803 = vunpack.c.l.b16 %v1764
      %v1804 = vpack.c.b16 %v1789, %v1788
      %v1805 = vpack.c.b16 %v1791, %v1790
      %v1806 = vpack.c.b16 %v1793, %v1792
      %v1807 = vpack.c.b16 %v1795, %v1794
      %v1808 = vpack.c.b16 %v1797, %v1796
      %v1809 = vpack.c.b16 %v1799, %v1798
      %v1810 = vpack.c.b16 %v1801, %v1800
      %v1811 = vpack.c.b16 %v1803, %v1802
      %1820 = vmatprep.subr.bf16.mxu0 0
      %1821 = vmatpush1.bf16.msra.mxu0 %v1811
      %1822 = vmatprep.subr.bf16.mxu0 0
      %1823 = vmatpush1.bf16.msra.mxu0 %v1810
      %1824 = vmatprep.subr.bf16.mxu0 0
      %1825 = vmatpush1.bf16.msra.mxu0 %v1809
      %1826 = vmatprep.subr.bf16.mxu0 0
      %1827 = vmatpush1.bf16.msra.mxu0 %v1808
      %1828 = vmatprep.subr.bf16.mxu0 0
      %1829 = vmatpush1.bf16.msra.mxu0 %v1807
      %1830 = vmatprep.subr.bf16.mxu0 0
      %1831 = vmatpush1.bf16.msra.mxu0 %v1806
      %1832 = vmatprep.subr.bf16.mxu0 0
      %1833 = vmatpush1.bf16.msra.mxu0 %v1805
      %1834 = vmatprep.subr.bf16.mxu0 0
      %1835 = vmatpush1.bf16.msra.mxu0 %v1804
      %1836 = vmatprep.subr.bf16.mxu0 0
      %1837 = vmatpush2.bf16.msra.mxu0 0
      %1838 = vmatprep.subr.bf16.mxu0 0
      %1839 = vmatpush2.bf16.msra.mxu0 0
      %1840 = vmatprep.subr.bf16.mxu0 0
      %1841 = vmatpush2.bf16.msra.mxu0 0
      %1842 = vmatprep.subr.bf16.mxu0 0
      %1843 = vmatpush2.bf16.msra.mxu0 0
      %1844 = vmatprep.subr.bf16.mxu0 0
      %1845 = vmatpush2.bf16.msra.mxu0 0
      %1846 = vmatprep.subr.bf16.mxu0 0
      %1847 = vmatpush2.bf16.msra.mxu0 0
      %1848 = vmatprep.subr.bf16.mxu0 0
      %1849 = vmatpush2.bf16.msra.mxu0 0
      %1850 = vmatprep.subr.bf16.mxu0 0
      %1851 = vmatpush2.bf16.msra.mxu0 0
      %1852 = vmatprep.mubr.bf16.mxu0 0
      %1853 = vmatmul.mubr.bf16.gmra.mxu0 %v1748
      %v1854 = vpop.f32.mrf.mxu0
      %v1855 = vadd.f32 %v1770, %v1854
      %v1856 = vpop.f32.mrf.mxu0
      %v1857 = vpop.f32.mrf.mxu0
      %v1858 = vadd.f32 %v1770, %v1857
      %v1859 = vpop.f32.mrf.mxu0
      %1860 = vdwg.mxu0
      %v1861 = vld [vmem:[%s676] sm:$0xff]
      %v1862 = vld [vmem:[%s676 + $0x8] sm:$0xff]
      %v1863 = vadd.f32 %v1855, %v1861
      %v1864 = vadd.f32 %v1858, %v1862
      %v1865 = vmul.f32 %v1863, %v1863
      %v1866 = vmul.f32 %v1864, %v1864
      %vm1867 = vcmask 23552
      %v1868 = vsel %vm1867, %v1865, 0.0
      %1869 = vadd.xlane.f32.xlu0 %v1868
      %v1870 = vpop.xlane.xlu0 %1869
      %v1871 = vsel %vm1867, %v1866, 0.0
      %1872 = vadd.xlane.f32.xlu0 %v1871
      %v1873 = vpop.xlane.xlu0 %1872
      %v1874 = vmax.f32 %v1870, 1e-24
      %v1875 = vmax.f32 %v1873, 1e-24
      %v1876 = vrsqrt.pop %v1874
      %v1877 = vrsqrt.pop %v1875
      %v1878 = vmul.f32 %v1863, %v1876
      %v1879 = vmul.f32 %v1864, %v1877
      %1880 = vst.msk [vmem:[%s697] sm:$0xff] %vm1867, %v1878
      %1881 = vst.msk [vmem:[%s697 + $0x8] sm:$0xff] %vm1867, %v1879
      %s1882 = smul.u32 2, %s34
      %p1883 = scmp.lt.s32.totalorder %s33, 1
      %s1884 = scalar_select %p1883, %s33, 1
      %p1885 = scmp.lt.s32.totalorder %s1882, 1
      %s1886 = scalar_select %p1885, %s1882, 1
      %s1887 = smul.addr %s1884, 2
      %s1888 = sadd.s32 %s1886, %s1887
      %s1889 = smul.addr %s1888, 8
      %s1890 = scalar_lea.vmem %s18, %s1889
      // Predicated region
      $region93: #{tpu_custom_call.1} parent=91 // pred_check
        %p1891 = pneg %p468
      $region94: #{tpu_custom_call.1} parent=91 // pred_check_branch
        %1893 = sbr.rel (%p1891) target = $region96
      $region95: #{tpu_custom_call.1} parent=91 // pred_region
        %s1894 = smul.u32 2, %s34
      $region96: #{tpu_custom_call.1} parent=91 // pred_fallthru
        _
    $region92: #{tpu_custom_call.1} parent=5 // pred_fallthru
      _
    %p1895 = scmp.le.s32.totalorder 2, %s24
    // Predicated region
    $region97: #{tpu_custom_call.1} parent=5 // pred_check
      %p1896 = pneg %p1895
    $region98: #{tpu_custom_call.1} parent=5 // pred_check_branch
      %1898 = sbr.rel (%p1896) target = $region100
    $region99: #{tpu_custom_call.1} parent=5 // pred_region
      %s1899 = ssub.s32 %s24, 2
      // Predicated region
      $region101: #{tpu_custom_call.1} parent=99 // pred_check
        %p1900 = pneg %p474
      $region102: #{tpu_custom_call.1} parent=99 // pred_check_branch
        %1902 = sbr.rel (%p1900) target = $region104
      $region103: #{tpu_custom_call.1} parent=99 // pred_region
        %s1903 = smul.u32 2, %s36
        %p1904 = scmp.lt.s32.totalorder %s35, 1
        %s1905 = scalar_select %p1904, %s35, 1
        %p1906 = scmp.lt.s32.totalorder %s1903, 1
        %s1907 = scalar_select %p1906, %s1903, 1
        %s1908 = smul.addr %s1905, 2
        %s1909 = sadd.s32 %s1907, %s1908
        %s1910 = smul.addr %s1909, 8
        %s1911 = scalar_lea.vmem %s18, %s1910
      $region104: #{tpu_custom_call.1} parent=99 // pred_fallthru
        _
    $region100: #{tpu_custom_call.1} parent=5 // pred_fallthru
      _
  $region6: #{tpu_custom_call.1} parent=0 // loop_footer
    %s28 = sadd.s32 1, %s24
  $region7: #{tpu_custom_call.1} parent=0 // loop_footer_branch
    %23 = sbr.rel target = $region3
  $region8: #{tpu_custom_call.1} parent=0 // loop_exit
    _

</llo_original>
